<compile_context>
chip_gen: v5e
topology: v5e:2x2
jax: 0.10.0
libtpu: 0.0.40
codegen_flags: <defaults>
</compile_context>

<pallas_src>
import functools

import jax
import jax.numpy as jnp
from jax import lax
from jax.experimental import pallas as pl
from jax.experimental.pallas import tpu as pltpu

NEG_SLOPE = 0.2
BN_EPS = 1e-5
# Per-block VMEM budget (inputs/outputs double-buffered + in-kernel temporaries),
# conservative so the same tiling is safe on v7x (64 MiB physical VMEM).
VMEM_BLOCK_BUDGET = 8 * 1024 * 1024


def _pick_images_per_step(N, H, W, Cin, Cout, *, target_rows=1024):
    """Images per pass-1 grid step: aim for >= target_rows matmul rows per step,
    keep >= 2 grid steps when N allows (v7x megacore / pipelining), stay in budget."""
    def block_bytes(nb):
        inp = nb * (H + 2) * (W + 2) * Cin * 4
        out = nb * H * W * Cout * 4
        patch = nb * H * W * 9 * Cin * 4
        return 2 * (inp + out) + patch + out   # double-buffered I/O + im2col + acc

    nb = max(1, min(N, max(1, target_rows // max(H * W, 1))))
    while nb > 1 and (N % nb != 0 or block_bytes(nb) > VMEM_BLOCK_BUDGET):
        nb -= 1
    if N >= 2 and N // nb < 2:
        cand = [d for d in range(1, nb) if N % d == 0 and N // d >= 2]
        if cand:
            nb = max(cand)
    return nb


def _pick_row_tile(M, Cout, *, target_rows=8192):
    """Pass-2 row-block size: large lane-parallel blocks, divisor of M, in budget."""
    bytes_per_row = Cout * 4 * 2                       # input + output, f32
    cap = max(8, VMEM_BLOCK_BUDGET // (2 * bytes_per_row))
    target = int(min(target_rows, cap))
    if M <= target:
        return M
    start = target - target % 8
    for d in range(start, 7, -8):
        if M % d == 0:
            return d
    return M


# ---------------------------------------------------------------------------
# Pass 1: conv as a single im2col MXU matmul per step + partial BN batch stats.
# ---------------------------------------------------------------------------
def _conv_stats_kernel(x_ref, w_ref, y_ref, stats_ref, *, NB, H, W, Cin, KH, KW):
    xs = x_ref[...]                                       # (NB, H+2, W+2, Cin)
    rows = NB * H * W

    # im2col patch built once per step; single matmul with K = KH*KW*Cin.
    cols = []
    for kh in range(KH):
        for kw in range(KW):
            cols.append(xs[:, kh:kh + H, kw:kw + W, :].reshape(rows, Cin))
    patch = jnp.concatenate(cols, axis=-1).astype(jnp.float32)   # (rows, KH*KW*Cin)

    acc = jnp.dot(patch, w_ref[...], preferred_element_type=jnp.float32)  # (rows, Cout)

    # Un-padded (real Cout) store of the conv intermediate.
    y_ref[...] = acc.reshape(y_ref.shape).astype(y_ref.dtype)

    # Per-step partial BatchNorm statistics (row 0 = sum, row 1 = sum of squares),
    # written to this step's own output block; reduced across steps in the wrapper.
    ssum = jnp.sum(acc, axis=0, keepdims=True)
    ssq = jnp.sum(acc * acc, axis=0, keepdims=True)
    stats_ref[...] = jnp.concatenate([ssum, ssq], axis=0)[None]


# ---------------------------------------------------------------------------
# Pass 2: y * scale + shift (folded BN), then LeakyReLU(0.2).
# ---------------------------------------------------------------------------
def _bn_lrelu_kernel(y_ref, scale_ref, shift_ref, o_ref):
    t = y_ref[...].astype(jnp.float32) * scale_ref[...] + shift_ref[...]
    o_ref[...] = jnp.maximum(t, NEG_SLOPE * t).astype(o_ref.dtype)


def conv_leaky_relu2d(x_nchw, weight_oihw, bias, gamma, beta):
    """Fused Conv2d(3x3, pad=1, stride=1) + BatchNorm2d(train) + LeakyReLU(0.2).

    x_nchw: (N, Cin, H, W); weight_oihw: (Cout, Cin, 3, 3); bias/gamma/beta: (Cout,)
    Returns (N, Cout, H, W).
    """
    N, Cin, H, W = x_nchw.shape
    Cout, Cin_w, KH, KW = weight_oihw.shape
    assert Cin_w == Cin and (KH, KW) == (3, 3)
    pad = 1
    dtype = x_nchw.dtype
    Hp, Wp = H + 2 * pad, W + 2 * pad
    K = KH * KW * Cin

    # NHWC + spatial zero padding for the 3x3 halo.
    # TODO(synk): fold the NCHW->NHWC relayout and halo zero-fill into the pass-1
    # DMA (boundary-masked copies) to avoid this extra HBM round trip of the input.
    x_nhwc = jnp.transpose(x_nchw, (0, 2, 3, 1))
    xpad = jnp.pad(x_nhwc, ((0, 0), (pad, pad), (pad, pad), (0, 0)))

    # OIHW -> (KH*KW*Cin, Cout) im2col weight matrix; Cout is kept at its real width
    # (no 128-lane padding) so intermediate/output HBM bytes are not inflated.
    w_mat = jnp.transpose(weight_oihw, (2, 3, 1, 0)).reshape(K, Cout).astype(jnp.float32)

    # The conv bias is a per-channel constant: training-mode BatchNorm removes it
    # exactly via the batch-mean subtraction and it does not change the variance,
    # so it is dropped from the fused computation (output is mathematically equal).
    del bias
    # TODO(synk): BatchNorm running_mean/running_var buffer updates (module state)
    # are not part of the returned forward value and are not emitted.

    NB = _pick_images_per_step(N, H, W, Cin, Cout)
    assert N % NB == 0
    G1 = N // NB
    # TODO(synk): re-introduce H-tiling with a halo'd input window for images too
    # large to stage whole in VMEM; whole-image blocks are ample at these shapes.

    kernel1 = functools.partial(_conv_stats_kernel,
                                NB=NB, H=H, W=W, Cin=Cin, KH=KH, KW=KW)

    y_conv, stats = pl.pallas_call(
        kernel1,
        out_shape=(
            jax.ShapeDtypeStruct((N, H, W, Cout), jnp.float32),
            jax.ShapeDtypeStruct((G1, 2, Cout), jnp.float32),
        ),
        grid_spec=pltpu.PrefetchScalarGridSpec(
            num_scalar_prefetch=0,
            grid=(G1,),
            in_specs=[
                pl.BlockSpec((NB, Hp, Wp, Cin), lambda g: (g, 0, 0, 0)),
                pl.BlockSpec((K, Cout), lambda g: (0, 0)),        # weights, VMEM-resident
            ],
            out_specs=(
                pl.BlockSpec((NB, H, W, Cout), lambda g: (g, 0, 0, 0)),
                pl.BlockSpec((1, 2, Cout), lambda g: (g, 0, 0)),  # per-step partial stats
            ),
        ),
        compiler_params=pltpu.CompilerParams(
            dimension_semantics=("parallel",),      # no cross-step state -> both v7x TCs
            vmem_limit_bytes=32 * 1024 * 1024,
        ),
    )(xpad, w_mat)

    # Fold BN into one per-channel scale/shift (tiny (Cout,) computation).
    # Note: variance uses E[x^2]-(E[x])^2 from f32 partial sums; adequate at these
    # sizes/tolerances (reviewer concern noted for very large N*H*W).
    stats_tot = jnp.sum(stats, axis=0)                     # (2, Cout)
    count = float(N * H * W)
    mean = stats_tot[0] / count
    var = jnp.maximum(stats_tot[1] / count - mean * mean, 0.0)
    scale = gamma.astype(jnp.float32) * lax.rsqrt(var + BN_EPS)
    shift = beta.astype(jnp.float32) - mean * scale
    scale = scale.reshape(1, Cout)
    shift = shift.reshape(1, Cout)

    # Pass 2 on the flattened (N*H*W, Cout) view with large row blocks.
    M = N * H * W
    TR = _pick_row_tile(M, Cout)
    G2 = M // TR
    y2d = y_conv.reshape(M, Cout)

    out2d = pl.pallas_call(
        _bn_lrelu_kernel,
        out_shape=jax.ShapeDtypeStruct((M, Cout), dtype),
        grid_spec=pltpu.PrefetchScalarGridSpec(
            num_scalar_prefetch=0,
            grid=(G2,),
            in_specs=[
                pl.BlockSpec((TR, Cout), lambda g: (g, 0)),
                pl.BlockSpec((1, Cout), lambda g: (0, 0)),
                pl.BlockSpec((1, Cout), lambda g: (0, 0)),
            ],
            out_specs=pl.BlockSpec((TR, Cout), lambda g: (g, 0)),
        ),
        compiler_params=pltpu.CompilerParams(
            dimension_semantics=("parallel",),
            vmem_limit_bytes=32 * 1024 * 1024,
        ),
    )(y2d, scale, shift)

    # Back to PyTorch NCHW layout (now over an UN-padded output, so this trailing
    # XLA transpose is 16x cheaper than before for Cout=8).
    # TODO(synk): emit NCHW directly from pass 2 (in-kernel lane->sublane transpose)
    # to drop this final transpose pass entirely.
    return jnp.transpose(out2d.reshape(N, H, W, Cout), (0, 3, 1, 2))


def reference_forward(x, w, b, gamma, beta):
    """Pure-JAX reference matching PyTorch semantics (training-mode BN)."""
    y = lax.conv_general_dilated(
        x, w, window_strides=(1, 1), padding=((1, 1), (1, 1)),
        dimension_numbers=("NCHW", "OIHW", "NCHW"),
    ) + b[None, :, None, None]
    mean = y.mean(axis=(0, 2, 3), keepdims=True)
    var = ((y - mean) ** 2).mean(axis=(0, 2, 3), keepdims=True)
    yn = (y - mean) / jnp.sqrt(var + BN_EPS)
    yn = yn * gamma[None, :, None, None] + beta[None, :, None, None]
    return jnp.where(yn >= 0, yn, NEG_SLOPE * yn)


if __name__ == "__main__":
    key = jax.random.PRNGKey(0)
    k_x, k_w, k_b = jax.random.split(key, 3)

    N, Cin, H, W = 2, 4, 16, 16
    Cout, KH, KW = 8, 3, 3

    x = jax.random.normal(k_x, (N, Cin, H, W), dtype=jnp.float32)

    # Deterministic parameter init (kaiming-uniform-like bounds, as nn.Conv2d).
    fan_in = Cin * KH * KW
    w_bound = (6.0 / fan_in) ** 0.5
    weight = jax.random.uniform(k_w, (Cout, Cin, KH, KW), jnp.float32,
                                minval=-w_bound, maxval=w_bound)
    b_bound = 1.0 / (fan_in ** 0.5)
    bias = jax.random.uniform(k_b, (Cout,), jnp.float32,
                              minval=-b_bound, maxval=b_bound)
    gamma = jnp.ones((Cout,), jnp.float32)   # BatchNorm2d weight init
    beta = jnp.zeros((Cout,), jnp.float32)   # BatchNorm2d bias init

    out = conv_leaky_relu2d(x, weight, bias, gamma, beta)
    out = jax.block_until_ready(out)

    ref = reference_forward(x, weight, bias, gamma, beta)
    assert out.shape == (N, Cout, H, W), out.shape
    err = float(jnp.max(jnp.abs(out - ref)))
    assert jnp.allclose(out, ref, rtol=2e-4, atol=2e-4), err

    print("KERNEL_OK")
</pallas_src>

<mosaic_0001>
module attributes {stable_mosaic.version = 11 : i64} {
  func.func @_conv_stats_kernel(%arg0: i32, %arg1: memref<1x18x18x4xf32, #tpu.memory_space<vmem>>, %arg2: memref<36x8xf32, #tpu.memory_space<vmem>>, %arg3: memref<1x16x16x8xf32, #tpu.memory_space<vmem>>, %arg4: memref<1x2x8xf32, #tpu.memory_space<vmem>>) attributes {dimension_semantics = [#tpu.dimension_semantics<parallel>], iteration_bounds = array<i64: 2>, scalar_prefetch = 0 : i64, scratch_operands = 0 : i64, tpu.core_type = #tpu.core_type<tc>, window_params = [{transform_indices = @transform_0, window_bounds = array<i64: 1, 18, 18, 4>}, {pipeline_mode = #tpu.pipeline_mode<synchronous>, transform_indices = @transform_1, window_bounds = array<i64: 36, 8>}, {transform_indices = @transform_2, window_bounds = array<i64: 1, 16, 16, 8>}, {transform_indices = @transform_3, window_bounds = array<i64: 1, 2, 8>}]} {
    %c0 = arith.constant 0 : index
    %c0_0 = arith.constant 0 : index
    %c0_1 = arith.constant 0 : index
    %c0_2 = arith.constant 0 : index
    %0 = vector.load %arg1[%c0, %c0_0, %c0_1, %c0_2] : memref<1x18x18x4xf32, #tpu.memory_space<vmem>>, vector<1x18x18x4xf32>
    %1 = vector.extract_strided_slice %0 {offsets = [0, 0, 0, 0], sizes = [1, 16, 16, 4], strides = [1, 1, 1, 1]} : vector<1x18x18x4xf32> to vector<1x16x16x4xf32>
    %2 = vector.shape_cast %1 : vector<1x16x16x4xf32> to vector<256x4xf32>
    %3 = vector.extract_strided_slice %0 {offsets = [0, 0, 1, 0], sizes = [1, 16, 16, 4], strides = [1, 1, 1, 1]} : vector<1x18x18x4xf32> to vector<1x16x16x4xf32>
    %4 = vector.shape_cast %3 : vector<1x16x16x4xf32> to vector<256x4xf32>
    %5 = vector.extract_strided_slice %0 {offsets = [0, 0, 2, 0], sizes = [1, 16, 16, 4], strides = [1, 1, 1, 1]} : vector<1x18x18x4xf32> to vector<1x16x16x4xf32>
    %6 = vector.shape_cast %5 : vector<1x16x16x4xf32> to vector<256x4xf32>
    %7 = vector.extract_strided_slice %0 {offsets = [0, 1, 0, 0], sizes = [1, 16, 16, 4], strides = [1, 1, 1, 1]} : vector<1x18x18x4xf32> to vector<1x16x16x4xf32>
    %8 = vector.shape_cast %7 : vector<1x16x16x4xf32> to vector<256x4xf32>
    %9 = vector.extract_strided_slice %0 {offsets = [0, 1, 1, 0], sizes = [1, 16, 16, 4], strides = [1, 1, 1, 1]} : vector<1x18x18x4xf32> to vector<1x16x16x4xf32>
    %10 = vector.shape_cast %9 : vector<1x16x16x4xf32> to vector<256x4xf32>
    %11 = vector.extract_strided_slice %0 {offsets = [0, 1, 2, 0], sizes = [1, 16, 16, 4], strides = [1, 1, 1, 1]} : vector<1x18x18x4xf32> to vector<1x16x16x4xf32>
    %12 = vector.shape_cast %11 : vector<1x16x16x4xf32> to vector<256x4xf32>
    %13 = vector.extract_strided_slice %0 {offsets = [0, 2, 0, 0], sizes = [1, 16, 16, 4], strides = [1, 1, 1, 1]} : vector<1x18x18x4xf32> to vector<1x16x16x4xf32>
    %14 = vector.shape_cast %13 : vector<1x16x16x4xf32> to vector<256x4xf32>
    %15 = vector.extract_strided_slice %0 {offsets = [0, 2, 1, 0], sizes = [1, 16, 16, 4], strides = [1, 1, 1, 1]} : vector<1x18x18x4xf32> to vector<1x16x16x4xf32>
    %16 = vector.shape_cast %15 : vector<1x16x16x4xf32> to vector<256x4xf32>
    %17 = vector.extract_strided_slice %0 {offsets = [0, 2, 2, 0], sizes = [1, 16, 16, 4], strides = [1, 1, 1, 1]} : vector<1x18x18x4xf32> to vector<1x16x16x4xf32>
    %18 = vector.shape_cast %17 : vector<1x16x16x4xf32> to vector<256x4xf32>
    %19 = tpu.concatenate %2, %4, %6, %8, %10, %12, %14, %16, %18 in 1 : vector<256x4xf32>, vector<256x4xf32>, vector<256x4xf32>, vector<256x4xf32>, vector<256x4xf32>, vector<256x4xf32>, vector<256x4xf32>, vector<256x4xf32>, vector<256x4xf32> -> vector<256x36xf32>
    %c0_3 = arith.constant 0 : index
    %c0_4 = arith.constant 0 : index
    %20 = vector.load %arg2[%c0_3, %c0_4] : memref<36x8xf32, #tpu.memory_space<vmem>>, vector<36x8xf32>
    %cst = arith.constant dense<0.000000e+00> : vector<256x8xf32>
    %21 = tpu.matmul %19, %20, %cst {dimension_numbers = #tpu.dot_dimension_numbers<[1], [0], [0], [1], [0, 0, 1, 1], [], []>} : vector<256x36xf32>, vector<36x8xf32>, vector<256x8xf32> -> vector<256x8xf32>
    %22 = vector.shape_cast %21 : vector<256x8xf32> to vector<1x16x16x8xf32>
    %c0_5 = arith.constant 0 : index
    %c0_6 = arith.constant 0 : index
    %c0_7 = arith.constant 0 : index
    %c0_8 = arith.constant 0 : index
    %23 = vector.load %arg3[%c0_5, %c0_6, %c0_7, %c0_8] : memref<1x16x16x8xf32, #tpu.memory_space<vmem>>, vector<1x16x16x8xf32>
    tpu.vector_store %arg3[%c0_5, %c0_6, %c0_7, %c0_8], %22 {strides = array<i32>} : memref<1x16x16x8xf32, #tpu.memory_space<vmem>>, vector<1x16x16x8xf32>,
    %cst_9 = arith.constant dense<0.000000e+00> : vector<8xf32>
    %24 = vector.multi_reduction <add>, %21, %cst_9 [0] : vector<256x8xf32> to vector<8xf32>
    %25 = vector.shape_cast %24 : vector<8xf32> to vector<1x8xf32>
    %26 = arith.mulf %21, %21 : vector<256x8xf32>
    %cst_10 = arith.constant dense<0.000000e+00> : vector<8xf32>
    %27 = vector.multi_reduction <add>, %26, %cst_10 [0] : vector<256x8xf32> to vector<8xf32>
    %28 = vector.shape_cast %27 : vector<8xf32> to vector<1x8xf32>
    %29 = tpu.concatenate %25, %28 in 0 : vector<1x8xf32>, vector<1x8xf32> -> vector<2x8xf32>
    %30 = vector.shape_cast %29 : vector<2x8xf32> to vector<1x2x8xf32>
    %c0_11 = arith.constant 0 : index
    %c0_12 = arith.constant 0 : index
    %c0_13 = arith.constant 0 : index
    %31 = vector.load %arg4[%c0_11, %c0_12, %c0_13] : memref<1x2x8xf32, #tpu.memory_space<vmem>>, vector<1x2x8xf32>
    tpu.vector_store %arg4[%c0_11, %c0_12, %c0_13], %30 {strides = array<i32>} : memref<1x2x8xf32, #tpu.memory_space<vmem>>, vector<1x2x8xf32>,
    return
  }
  func.func @transform_0(%arg0: i32) -> (i32, i32, i32, i32) {
    %c0_i32 = arith.constant 0 : i32
    %c0_i32_0 = arith.constant 0 : i32
    %c0_i32_1 = arith.constant 0 : i32
    %c0_i32_2 = arith.constant 0 : i32
    return %arg0, %c0_i32, %c0_i32_0, %c0_i32_1 : i32, i32, i32, i32
  }
  func.func @transform_1(%arg0: i32) -> (i32, i32) {
    %c0_i32 = arith.constant 0 : i32
    %c0_i32_0 = arith.constant 0 : i32
    %c0_i32_1 = arith.constant 0 : i32
    return %c0_i32, %c0_i32_0 : i32, i32
  }
  func.func @transform_2(%arg0: i32) -> (i32, i32, i32, i32) {
    %c0_i32 = arith.constant 0 : i32
    %c0_i32_0 = arith.constant 0 : i32
    %c0_i32_1 = arith.constant 0 : i32
    %c0_i32_2 = arith.constant 0 : i32
    return %arg0, %c0_i32, %c0_i32_0, %c0_i32_1 : i32, i32, i32, i32
  }
  func.func @transform_3(%arg0: i32) -> (i32, i32, i32) {
    %c0_i32 = arith.constant 0 : i32
    %c0_i32_0 = arith.constant 0 : i32
    %c0_i32_1 = arith.constant 0 : i32
    return %arg0, %c0_i32, %c0_i32_0 : i32, i32, i32
  }
}

</mosaic_0001>

<llo_original>
// kernel: tpu_custom_call.1
$region0: #{tpu_custom_call.1}
  #allocation0 [shape = 'u32[]', space=smem, size = 0x4, offset = 0x4, fixed_abs, tag = 'smem constant byte address 0x4 - core index']
  #allocation1 [shape = 'u32[72,128]{1,0:T(1,128)}', space=vmem, size = 0x9000, scoped, tag = 'internal scratch']
  %s0 = inlined_call_operand.vmem [shape: f32[2,18,18,4], index: 0, kind: input, shape index: {}]
  %s1 = inlined_call_operand.vmem [shape: f32[36,8], index: 1, kind: input, shape index: {}]
  %s2 = inlined_call_operand.vmem [shape: f32[2,16,16,8], index: 2, kind: output, shape index: {0}]
  %s3 = inlined_call_operand.hbm [shape: f32[2,2,8], index: 3, kind: output, shape index: {1}]
  %4 = xla_tuple %s2, %s3
  %s5 = sld [smem:[#allocation0]]
  $region49: #{tpu_custom_call.1} parent=0
    _
  %s7 = ssub.s32 1, %s5
  %s8 = scalar_select 0, %s7, %s5
  $region1: #{tpu_custom_call.1} parent=0
    #allocation2 [shape = 'u8[2048]{0}', space=vmem, size = 0x800, scoped, tag = 'output window, operand 1']
    #allocation3 [shape = 's32[2]{0}', space=sflag, size = 0x8, scoped, tag = 'scoped memory for tpu_custom_call.1']
    %9 = vsyncpa [#allocation3], 0
    %s10 = scalar_lea.sflag [#allocation3], 1
    %11 = vsyncpa %s10, 0
    loop: start=0, step=1, limit=4
    $region2: #{tpu_custom_call.1} parent=1 // loop_pre_header
      _
    $region3: #{tpu_custom_call.1} parent=1 // loop_header
      %s13 = sphi 0, %s17
      %p14 = scmp.ge.s32.totalorder %s13, 4
      %s23 = sphi 0, %s25
      %s26 = sphi 0, %s23
      %s27 = sphi 0, %s26
      %s43 = sphi 0, %s27
      %s47 = sphi 0, %s47
      %s49 = sphi 0, %s47
      %s50 = sphi 0, %s49
      %s64 = sphi 0, %s50
      %s70 = sphi 0, %s72
      %s73 = sphi 0, %s70
      %s74 = sphi 0, %s73
      %s90 = sphi 0, %s74
      %s96 = sphi 0, %s98
      %s99 = sphi 0, %s96
      %s100 = sphi 0, %s99
      %s116 = sphi 0, %s100
    $region4: #{tpu_custom_call.1} parent=1 // loop_header_branch
      %16 = sbr.rel (%p14) target = $region8
    $region5: #{tpu_custom_call.1} parent=1 // loop_body
      %s18 = ssub.s32 %s13, 1
      %s19 = ssub.s32 %s13, 2
      %s20 = sadd.s32 %s13, 1
      %s21 = ssub.s32 %s13, %s20
      %p22 = scmp.eq.s32.totalorder %s21, 0
      %s24 = sadd.s32 %s23, 1
      %s25 = scalar_select %p22, %s23, %s24
      %p28 = pneg %p22
      %p29 = scmp.eq.s32.totalorder %s13, 1
      %p30 = por %p28, %p29
      %p31 = scmp.ne.s32.totalorder %s23, %s26
      %p32 = scmp.eq.s32.totalorder %s13, 0
      %p33 = por %p31, %p32
      %p34 = scmp.ne.s32.totalorder %s23, %s26
      %p35 = scmp.eq.s32.totalorder %s18, 1
      %p36 = por %p34, %p35
      %p37 = scmp.ne.s32.totalorder %s26, %s27
      %p38 = scmp.eq.s32.totalorder %s18, 0
      %p39 = por %p37, %p38
      %p40 = scmp.ne.s32.totalorder %s26, %s27
      %p41 = scmp.eq.s32.totalorder %s19, 1
      %p42 = por %p40, %p41
      %p44 = scmp.ne.s32.totalorder %s27, %s43
      %p45 = scmp.eq.s32.totalorder %s19, 0
      %p46 = por %p44, %p45
      %s48 = sadd.s32 %s47, 1
      %p51 = scmp.eq.s32.totalorder %s13, 1
      %p52 = scmp.ne.s32.totalorder %s47, %s49
      %p53 = scmp.eq.s32.totalorder %s13, 0
      %p54 = por %p52, %p53
      %p55 = scmp.ne.s32.totalorder %s47, %s49
      %p56 = scmp.eq.s32.totalorder %s18, 1
      %p57 = por %p55, %p56
      %p58 = scmp.ne.s32.totalorder %s49, %s50
      %p59 = scmp.eq.s32.totalorder %s18, 0
      %p60 = por %p58, %p59
      %p61 = scmp.ne.s32.totalorder %s49, %s50
      %p62 = scmp.eq.s32.totalorder %s19, 1
      %p63 = por %p61, %p62
      %p65 = scmp.ne.s32.totalorder %s50, %s64
      %p66 = scmp.eq.s32.totalorder %s19, 0
      %p67 = por %p65, %p66
      %s68 = ssub.s32 %s13, %s20
      %p69 = scmp.eq.s32.totalorder %s68, 0
      %s71 = sadd.s32 %s70, 1
      %s72 = scalar_select %p69, %s70, %s71
      %p75 = pneg %p69
      %p76 = scmp.eq.s32.totalorder %s13, 1
      %p77 = por %p75, %p76
      %p78 = scmp.ne.s32.totalorder %s70, %s73
      %p79 = scmp.eq.s32.totalorder %s13, 0
      %p80 = por %p78, %p79
      %p81 = scmp.ne.s32.totalorder %s70, %s73
      %p82 = scmp.eq.s32.totalorder %s18, 1
      %p83 = por %p81, %p82
      %p84 = scmp.ne.s32.totalorder %s73, %s74
      %p85 = scmp.eq.s32.totalorder %s18, 0
      %p86 = por %p84, %p85
      %p87 = scmp.ne.s32.totalorder %s73, %s74
      %p88 = scmp.eq.s32.totalorder %s19, 1
      %p89 = por %p87, %p88
      %p91 = scmp.ne.s32.totalorder %s74, %s90
      %p92 = scmp.eq.s32.totalorder %s19, 0
      %p93 = por %p91, %p92
      %s94 = ssub.s32 %s13, %s20
      %p95 = scmp.eq.s32.totalorder %s94, 0
      %s97 = sadd.s32 %s96, 1
      %s98 = scalar_select %p95, %s96, %s97
      %p101 = pneg %p95
      %p102 = scmp.eq.s32.totalorder %s13, 1
      %p103 = por %p101, %p102
      %p104 = scmp.ne.s32.totalorder %s96, %s99
      %p105 = scmp.eq.s32.totalorder %s13, 0
      %p106 = por %p104, %p105
      %p107 = scmp.ne.s32.totalorder %s96, %s99
      %p108 = scmp.eq.s32.totalorder %s18, 1
      %p109 = por %p107, %p108
      %p110 = scmp.ne.s32.totalorder %s99, %s100
      %p111 = scmp.eq.s32.totalorder %s18, 0
      %p112 = por %p110, %p111
      %p113 = scmp.ne.s32.totalorder %s99, %s100
      %p114 = scmp.eq.s32.totalorder %s19, 1
      %p115 = por %p113, %p114
      %p117 = scmp.ne.s32.totalorder %s100, %s116
      %p118 = scmp.eq.s32.totalorder %s19, 0
      %p119 = por %p117, %p118
      %p120 = scmp.le.s32.totalorder 1, %s13
      %p121 = scmp.lt.s32.totalorder %s13, 3
      %p122 = pnand %p120, %p121
      %p123 = pneg %p122
      // Predicated region
      $region9: #{tpu_custom_call.1} parent=5 // pred_check
        _
      $region10: #{tpu_custom_call.1} parent=5 // pred_check_branch
        %125 = sbr.rel (%p122) target = $region12
      $region11: #{tpu_custom_call.1} parent=5 // pred_region
        %s126 = ssub.s32 %s13, 1
        // Predicated region
        $region13: #{tpu_custom_call.1} parent=11 // pred_check
          %p127 = pneg %p60
        $region14: #{tpu_custom_call.1} parent=11 // pred_check_branch
          %129 = sbr.rel (%p127) target = $region16
        $region15: #{tpu_custom_call.1} parent=11 // pred_region
          _
        $region16: #{tpu_custom_call.1} parent=11 // pred_fallthru
          _
      $region12: #{tpu_custom_call.1} parent=5 // pred_fallthru
        _
      %p130 = scmp.lt.s32.totalorder %s13, 2
      // Predicated region
      $region17: #{tpu_custom_call.1} parent=5 // pred_check
        %p131 = pneg %p130
      $region18: #{tpu_custom_call.1} parent=5 // pred_check_branch
        %133 = sbr.rel (%p131) target = $region20
      $region19: #{tpu_custom_call.1} parent=5 // pred_region
        // Predicated region
        $region21: #{tpu_custom_call.1} parent=19 // pred_check
          %p134 = pneg %p33
        $region22: #{tpu_custom_call.1} parent=19 // pred_check_branch
          %136 = sbr.rel (%p134) target = $region24
        $region23: #{tpu_custom_call.1} parent=19 // pred_region
          %p137 = scmp.lt.s32.totalorder %s13, 1
          %s138 = scalar_select %p137, %s13, 1
          %s139 = smul.addr %s138, 54
          %s140 = smul.addr %s139, 8
          %s141 = scalar_lea.vmem %s0, %s140
        $region24: #{tpu_custom_call.1} parent=19 // pred_fallthru
          _
      $region20: #{tpu_custom_call.1} parent=5 // pred_fallthru
        _
      %p142 = scmp.le.s32.totalorder 1, %s13
      %p143 = scmp.lt.s32.totalorder %s13, 3
      %p144 = pnand %p142, %p143
      %p145 = pneg %p144
      // Predicated region
      $region25: #{tpu_custom_call.1} parent=5 // pred_check
        _
      $region26: #{tpu_custom_call.1} parent=5 // pred_check_branch
        %147 = sbr.rel (%p144) target = $region28
      $region27: #{tpu_custom_call.1} parent=5 // pred_region
        %s148 = ssub.s32 %s13, 1
        %p149 = scmp.lt.s32.totalorder %s18, 1
        %s150 = scalar_select %p149, %s18, 1
        %s151 = smul.addr %s150, 54
        %s152 = smul.addr %s151, 8
        %s153 = scalar_lea.vmem %s0, %s152
        %p154 = pneg %p39
        %p155 = pneg %p36
        %p156 = pneg %p60
        %p157 = pneg %p57
        %p158 = pneg %p86
        %p159 = pneg %p83
        %p160 = scmp.lt.s32.totalorder %s18, 1
        %s161 = scalar_select %p160, %s18, 1
        %s162 = smul.addr %s161, 32
        %s163 = smul.addr %s162, 8
        %s164 = scalar_lea.vmem %s2, %s163
        %p165 = pneg %p112
        %p166 = pneg %p109
        %s167 = sand.u32 %s99, 1
        %s168 = scalar_lea.sflag [#allocation3], %s167
        %s169 = sand.u32 %s99, 1
        %s170 = smul.addr %s169, 2
        %s171 = scalar_lea.vmem [#allocation2], %s170
        %p172 = scmp.lt.s32.totalorder %s18, 1
        %s173 = scalar_select %p172, %s18, 1
        %s174 = smul.addr %s173, 54
        %s175 = smul.addr %s174, 8
        %s176 = scalar_lea.vmem %s0, %s175
        %p177 = scmp.lt.s32.totalorder %s18, 1
        %s178 = scalar_select %p177, %s18, 1
        %s179 = smul.addr %s178, 32
        %s180 = smul.addr %s179, 8
        %s181 = scalar_lea.vmem %s2, %s180
        %v182 = vld [vmem:[%s176] sm:$0xff]
        %v183 = vld [vmem:[%s176 + $0x8] sm:$0xff]
        %v184 = vld [vmem:[%s176 + $0x10] sm:$0x3]
        %v185 = vld [vmem:[%s176 + $0x18] sm:$0xff]
        %v186 = vld [vmem:[%s176 + $0x20] sm:$0xff]
        %v187 = vld [vmem:[%s176 + $0x28] sm:$0x3]
        %v188 = vld [vmem:[%s176 + $0x30] sm:$0xff]
        %v189 = vld [vmem:[%s176 + $0x38] sm:$0xff]
        %v190 = vld [vmem:[%s176 + $0x40] sm:$0x3]
        %v191 = vld [vmem:[%s176 + $0x48] sm:$0xff]
        %v192 = vld [vmem:[%s176 + $0x50] sm:$0xff]
        %v193 = vld [vmem:[%s176 + $0x58] sm:$0x3]
        %v194 = vld [vmem:[%s176 + $0x60] sm:$0xff]
        %v195 = vld [vmem:[%s176 + $0x68] sm:$0xff]
        %v196 = vld [vmem:[%s176 + $0x70] sm:$0x3]
        %v197 = vld [vmem:[%s176 + $0x78] sm:$0xff]
        %v198 = vld [vmem:[%s176 + $0x80] sm:$0xff]
        %v199 = vld [vmem:[%s176 + $0x88] sm:$0x3]
        %v200 = vld [vmem:[%s176 + $0x90] sm:$0xff]
        %v201 = vld [vmem:[%s176 + $0x98] sm:$0xff]
        %v202 = vld [vmem:[%s176 + $0xa0] sm:$0x3]
        %v203 = vld [vmem:[%s176 + $0xa8] sm:$0xff]
        %v204 = vld [vmem:[%s176 + $0xb0] sm:$0xff]
        %v205 = vld [vmem:[%s176 + $0xb8] sm:$0x3]
        %v206 = vld [vmem:[%s176 + $0xc0] sm:$0xff]
        %v207 = vld [vmem:[%s176 + $0xc8] sm:$0xff]
        %v208 = vld [vmem:[%s176 + $0xd0] sm:$0x3]
        %v209 = vld [vmem:[%s176 + $0xd8] sm:$0xff]
        %v210 = vld [vmem:[%s176 + $0xe0] sm:$0xff]
        %v211 = vld [vmem:[%s176 + $0xe8] sm:$0x3]
        %v212 = vld [vmem:[%s176 + $0xf0] sm:$0xff]
        %v213 = vld [vmem:[%s176 + $0xf8] sm:$0xff]
        %v214 = vld [vmem:[%s176 + $0x100] sm:$0x3]
        %v215 = vld [vmem:[%s176 + $0x108] sm:$0xff]
        %v216 = vld [vmem:[%s176 + $0x110] sm:$0xff]
        %v217 = vld [vmem:[%s176 + $0x118] sm:$0x3]
        %v218 = vld [vmem:[%s176 + $0x120] sm:$0xff]
        %v219 = vld [vmem:[%s176 + $0x128] sm:$0xff]
        %v220 = vld [vmem:[%s176 + $0x130] sm:$0x3]
        %v221 = vld [vmem:[%s176 + $0x138] sm:$0xff]
        %v222 = vld [vmem:[%s176 + $0x140] sm:$0xff]
        %v223 = vld [vmem:[%s176 + $0x148] sm:$0x3]
        %v224 = vld [vmem:[%s176 + $0x150] sm:$0xff]
        %v225 = vld [vmem:[%s176 + $0x158] sm:$0xff]
        %v226 = vld [vmem:[%s176 + $0x160] sm:$0x3]
        %v227 = vld [vmem:[%s176 + $0x168] sm:$0xff]
        %v228 = vld [vmem:[%s176 + $0x170] sm:$0xff]
        %v229 = vld [vmem:[%s176 + $0x178] sm:$0x3]
        %v230 = vld [vmem:[%s176 + $0x180] sm:$0xff]
        %v231 = vld [vmem:[%s176 + $0x188] sm:$0xff]
        %v232 = vld [vmem:[%s176 + $0x190] sm:$0x3]
        %v233 = vld [vmem:[%s176 + $0x198] sm:$0xff]
        %v234 = vld [vmem:[%s176 + $0x1a0] sm:$0xff]
        %v235 = vld [vmem:[%s176 + $0x1a8] sm:$0x3]
        %vm284 = vcmask 1046528
        %v285 = vrot.slane %v182, 1
        %v286 = vrot.slane %v183, 1
        %v287 = vsel %vm284, %v285, %v286
        %v288 = vrot.slane %v184, 1
        %v289 = vsel %vm284, %v286, %v288
        %v290 = vrot.slane %v185, 1
        %v291 = vrot.slane %v186, 1
        %v292 = vsel %vm284, %v290, %v291
        %v293 = vrot.slane %v187, 1
        %v294 = vsel %vm284, %v291, %v293
        %v295 = vrot.slane %v188, 1
        %v296 = vrot.slane %v189, 1
        %v297 = vsel %vm284, %v295, %v296
        %v298 = vrot.slane %v190, 1
        %v299 = vsel %vm284, %v296, %v298
        %v300 = vrot.slane %v191, 1
        %v301 = vrot.slane %v192, 1
        %v302 = vsel %vm284, %v300, %v301
        %v303 = vrot.slane %v193, 1
        %v304 = vsel %vm284, %v301, %v303
        %v305 = vrot.slane %v194, 1
        %v306 = vrot.slane %v195, 1
        %v307 = vsel %vm284, %v305, %v306
        %v308 = vrot.slane %v196, 1
        %v309 = vsel %vm284, %v306, %v308
        %v310 = vrot.slane %v197, 1
        %v311 = vrot.slane %v198, 1
        %v312 = vsel %vm284, %v310, %v311
        %v313 = vrot.slane %v199, 1
        %v314 = vsel %vm284, %v311, %v313
        %v315 = vrot.slane %v200, 1
        %v316 = vrot.slane %v201, 1
        %v317 = vsel %vm284, %v315, %v316
        %v318 = vrot.slane %v202, 1
        %v319 = vsel %vm284, %v316, %v318
        %v320 = vrot.slane %v203, 1
        %v321 = vrot.slane %v204, 1
        %v322 = vsel %vm284, %v320, %v321
        %v323 = vrot.slane %v205, 1
        %v324 = vsel %vm284, %v321, %v323
        %v325 = vrot.slane %v206, 1
        %v326 = vrot.slane %v207, 1
        %v327 = vsel %vm284, %v325, %v326
        %v328 = vrot.slane %v208, 1
        %v329 = vsel %vm284, %v326, %v328
        %v330 = vrot.slane %v209, 1
        %v331 = vrot.slane %v210, 1
        %v332 = vsel %vm284, %v330, %v331
        %v333 = vrot.slane %v211, 1
        %v334 = vsel %vm284, %v331, %v333
        %v335 = vrot.slane %v212, 1
        %v336 = vrot.slane %v213, 1
        %v337 = vsel %vm284, %v335, %v336
        %v338 = vrot.slane %v214, 1
        %v339 = vsel %vm284, %v336, %v338
        %v340 = vrot.slane %v215, 1
        %v341 = vrot.slane %v216, 1
        %v342 = vsel %vm284, %v340, %v341
        %v343 = vrot.slane %v217, 1
        %v344 = vsel %vm284, %v341, %v343
        %v345 = vrot.slane %v218, 1
        %v346 = vrot.slane %v219, 1
        %v347 = vsel %vm284, %v345, %v346
        %v348 = vrot.slane %v220, 1
        %v349 = vsel %vm284, %v346, %v348
        %v350 = vrot.slane %v221, 1
        %v351 = vrot.slane %v222, 1
        %v352 = vsel %vm284, %v350, %v351
        %v353 = vrot.slane %v223, 1
        %v354 = vsel %vm284, %v351, %v353
        %v355 = vrot.slane %v224, 1
        %v356 = vrot.slane %v225, 1
        %v357 = vsel %vm284, %v355, %v356
        %v358 = vrot.slane %v226, 1
        %v359 = vsel %vm284, %v356, %v358
        %v360 = vrot.slane %v227, 1
        %v361 = vrot.slane %v228, 1
        %v362 = vsel %vm284, %v360, %v361
        %v363 = vrot.slane %v229, 1
        %v364 = vsel %vm284, %v361, %v363
        %vm365 = vcmask 1045504
        %v366 = vrot.slane %v182, 2
        %v367 = vrot.slane %v183, 2
        %v368 = vsel %vm365, %v366, %v367
        %v369 = vrot.slane %v184, 2
        %v370 = vsel %vm365, %v367, %v369
        %v371 = vrot.slane %v185, 2
        %v372 = vrot.slane %v186, 2
        %v373 = vsel %vm365, %v371, %v372
        %v374 = vrot.slane %v187, 2
        %v375 = vsel %vm365, %v372, %v374
        %v376 = vrot.slane %v188, 2
        %v377 = vrot.slane %v189, 2
        %v378 = vsel %vm365, %v376, %v377
        %v379 = vrot.slane %v190, 2
        %v380 = vsel %vm365, %v377, %v379
        %v381 = vrot.slane %v191, 2
        %v382 = vrot.slane %v192, 2
        %v383 = vsel %vm365, %v381, %v382
        %v384 = vrot.slane %v193, 2
        %v385 = vsel %vm365, %v382, %v384
        %v386 = vrot.slane %v194, 2
        %v387 = vrot.slane %v195, 2
        %v388 = vsel %vm365, %v386, %v387
        %v389 = vrot.slane %v196, 2
        %v390 = vsel %vm365, %v387, %v389
        %v391 = vrot.slane %v197, 2
        %v392 = vrot.slane %v198, 2
        %v393 = vsel %vm365, %v391, %v392
        %v394 = vrot.slane %v199, 2
        %v395 = vsel %vm365, %v392, %v394
        %v396 = vrot.slane %v200, 2
        %v397 = vrot.slane %v201, 2
        %v398 = vsel %vm365, %v396, %v397
        %v399 = vrot.slane %v202, 2
        %v400 = vsel %vm365, %v397, %v399
        %v401 = vrot.slane %v203, 2
        %v402 = vrot.slane %v204, 2
        %v403 = vsel %vm365, %v401, %v402
        %v404 = vrot.slane %v205, 2
        %v405 = vsel %vm365, %v402, %v404
        %v406 = vrot.slane %v206, 2
        %v407 = vrot.slane %v207, 2
        %v408 = vsel %vm365, %v406, %v407
        %v409 = vrot.slane %v208, 2
        %v410 = vsel %vm365, %v407, %v409
        %v411 = vrot.slane %v209, 2
        %v412 = vrot.slane %v210, 2
        %v413 = vsel %vm365, %v411, %v412
        %v414 = vrot.slane %v211, 2
        %v415 = vsel %vm365, %v412, %v414
        %v416 = vrot.slane %v212, 2
        %v417 = vrot.slane %v213, 2
        %v418 = vsel %vm365, %v416, %v417
        %v419 = vrot.slane %v214, 2
        %v420 = vsel %vm365, %v417, %v419
        %v421 = vrot.slane %v215, 2
        %v422 = vrot.slane %v216, 2
        %v423 = vsel %vm365, %v421, %v422
        %v424 = vrot.slane %v217, 2
        %v425 = vsel %vm365, %v422, %v424
        %v426 = vrot.slane %v218, 2
        %v427 = vrot.slane %v219, 2
        %v428 = vsel %vm365, %v426, %v427
        %v429 = vrot.slane %v220, 2
        %v430 = vsel %vm365, %v427, %v429
        %v431 = vrot.slane %v221, 2
        %v432 = vrot.slane %v222, 2
        %v433 = vsel %vm365, %v431, %v432
        %v434 = vrot.slane %v223, 2
        %v435 = vsel %vm365, %v432, %v434
        %v436 = vrot.slane %v224, 2
        %v437 = vrot.slane %v225, 2
        %v438 = vsel %vm365, %v436, %v437
        %v439 = vrot.slane %v226, 2
        %v440 = vsel %vm365, %v437, %v439
        %v441 = vrot.slane %v227, 2
        %v442 = vrot.slane %v228, 2
        %v443 = vsel %vm365, %v441, %v442
        %v444 = vrot.slane %v229, 2
        %v445 = vsel %vm365, %v442, %v444
        %v449 = vrot.slane %v230, 1
        %v450 = vrot.slane %v231, 1
        %v451 = vsel %vm284, %v449, %v450
        %v452 = vrot.slane %v232, 1
        %v453 = vsel %vm284, %v450, %v452
        %v454 = vrot.slane %v230, 2
        %v455 = vrot.slane %v231, 2
        %v456 = vsel %vm365, %v454, %v455
        %v457 = vrot.slane %v232, 2
        %v458 = vsel %vm365, %v455, %v457
        %v462 = vrot.slane %v233, 1
        %v463 = vrot.slane %v234, 1
        %v464 = vsel %vm284, %v462, %v463
        %v465 = vrot.slane %v235, 1
        %v466 = vsel %vm284, %v463, %v465
        %v467 = vrot.slane %v233, 2
        %v468 = vrot.slane %v234, 2
        %v469 = vsel %vm365, %v467, %v468
        %v470 = vrot.slane %v235, 2
        %v471 = vsel %vm365, %v468, %v470
        %472 = vrot.lane.b32.xlu0 %v287, 4
        %v473 = vpop.permute.xlu0 %472
        %474 = vrot.lane.b32.xlu0 %v289, 4
        %v475 = vpop.permute.xlu0 %474
        %476 = vrot.lane.b32.xlu0 %v292, 4
        %v477 = vpop.permute.xlu0 %476
        %478 = vrot.lane.b32.xlu0 %v294, 4
        %v479 = vpop.permute.xlu0 %478
        %480 = vrot.lane.b32.xlu0 %v297, 4
        %v481 = vpop.permute.xlu0 %480
        %482 = vrot.lane.b32.xlu0 %v299, 4
        %v483 = vpop.permute.xlu0 %482
        %484 = vrot.lane.b32.xlu0 %v302, 4
        %v485 = vpop.permute.xlu0 %484
        %486 = vrot.lane.b32.xlu0 %v304, 4
        %v487 = vpop.permute.xlu0 %486
        %488 = vrot.lane.b32.xlu0 %v307, 4
        %v489 = vpop.permute.xlu0 %488
        %490 = vrot.lane.b32.xlu0 %v309, 4
        %v491 = vpop.permute.xlu0 %490
        %492 = vrot.lane.b32.xlu0 %v312, 4
        %v493 = vpop.permute.xlu0 %492
        %494 = vrot.lane.b32.xlu0 %v314, 4
        %v495 = vpop.permute.xlu0 %494
        %496 = vrot.lane.b32.xlu0 %v317, 4
        %v497 = vpop.permute.xlu0 %496
        %498 = vrot.lane.b32.xlu0 %v319, 4
        %v499 = vpop.permute.xlu0 %498
        %500 = vrot.lane.b32.xlu0 %v322, 4
        %v501 = vpop.permute.xlu0 %500
        %502 = vrot.lane.b32.xlu0 %v324, 4
        %v503 = vpop.permute.xlu0 %502
        %504 = vrot.lane.b32.xlu0 %v327, 4
        %v505 = vpop.permute.xlu0 %504
        %506 = vrot.lane.b32.xlu0 %v329, 4
        %v507 = vpop.permute.xlu0 %506
        %508 = vrot.lane.b32.xlu0 %v332, 4
        %v509 = vpop.permute.xlu0 %508
        %510 = vrot.lane.b32.xlu0 %v334, 4
        %v511 = vpop.permute.xlu0 %510
        %512 = vrot.lane.b32.xlu0 %v337, 4
        %v513 = vpop.permute.xlu0 %512
        %514 = vrot.lane.b32.xlu0 %v339, 4
        %v515 = vpop.permute.xlu0 %514
        %516 = vrot.lane.b32.xlu0 %v342, 4
        %v517 = vpop.permute.xlu0 %516
        %518 = vrot.lane.b32.xlu0 %v344, 4
        %v519 = vpop.permute.xlu0 %518
        %520 = vrot.lane.b32.xlu0 %v347, 4
        %v521 = vpop.permute.xlu0 %520
        %522 = vrot.lane.b32.xlu0 %v349, 4
        %v523 = vpop.permute.xlu0 %522
        %524 = vrot.lane.b32.xlu0 %v352, 4
        %v525 = vpop.permute.xlu0 %524
        %526 = vrot.lane.b32.xlu0 %v354, 4
        %v527 = vpop.permute.xlu0 %526
        %528 = vrot.lane.b32.xlu0 %v357, 4
        %v529 = vpop.permute.xlu0 %528
        %530 = vrot.lane.b32.xlu0 %v359, 4
        %v531 = vpop.permute.xlu0 %530
        %532 = vrot.lane.b32.xlu0 %v362, 4
        %v533 = vpop.permute.xlu0 %532
        %534 = vrot.lane.b32.xlu0 %v364, 4
        %v535 = vpop.permute.xlu0 %534
        %568 = vrot.lane.b32.xlu0 %v368, 8
        %v569 = vpop.permute.xlu0 %568
        %570 = vrot.lane.b32.xlu0 %v370, 8
        %v571 = vpop.permute.xlu0 %570
        %572 = vrot.lane.b32.xlu0 %v373, 8
        %v573 = vpop.permute.xlu0 %572
        %574 = vrot.lane.b32.xlu0 %v375, 8
        %v575 = vpop.permute.xlu0 %574
        %576 = vrot.lane.b32.xlu0 %v378, 8
        %v577 = vpop.permute.xlu0 %576
        %578 = vrot.lane.b32.xlu0 %v380, 8
        %v579 = vpop.permute.xlu0 %578
        %580 = vrot.lane.b32.xlu0 %v383, 8
        %v581 = vpop.permute.xlu0 %580
        %582 = vrot.lane.b32.xlu0 %v385, 8
        %v583 = vpop.permute.xlu0 %582
        %584 = vrot.lane.b32.xlu0 %v388, 8
        %v585 = vpop.permute.xlu0 %584
        %586 = vrot.lane.b32.xlu0 %v390, 8
        %v587 = vpop.permute.xlu0 %586
        %588 = vrot.lane.b32.xlu0 %v393, 8
        %v589 = vpop.permute.xlu0 %588
        %590 = vrot.lane.b32.xlu0 %v395, 8
        %v591 = vpop.permute.xlu0 %590
        %592 = vrot.lane.b32.xlu0 %v398, 8
        %v593 = vpop.permute.xlu0 %592
        %594 = vrot.lane.b32.xlu0 %v400, 8
        %v595 = vpop.permute.xlu0 %594
        %596 = vrot.lane.b32.xlu0 %v403, 8
        %v597 = vpop.permute.xlu0 %596
        %598 = vrot.lane.b32.xlu0 %v405, 8
        %v599 = vpop.permute.xlu0 %598
        %600 = vrot.lane.b32.xlu0 %v408, 8
        %v601 = vpop.permute.xlu0 %600
        %602 = vrot.lane.b32.xlu0 %v410, 8
        %v603 = vpop.permute.xlu0 %602
        %604 = vrot.lane.b32.xlu0 %v413, 8
        %v605 = vpop.permute.xlu0 %604
        %606 = vrot.lane.b32.xlu0 %v415, 8
        %v607 = vpop.permute.xlu0 %606
        %608 = vrot.lane.b32.xlu0 %v418, 8
        %v609 = vpop.permute.xlu0 %608
        %610 = vrot.lane.b32.xlu0 %v420, 8
        %v611 = vpop.permute.xlu0 %610
        %612 = vrot.lane.b32.xlu0 %v423, 8
        %v613 = vpop.permute.xlu0 %612
        %614 = vrot.lane.b32.xlu0 %v425, 8
        %v615 = vpop.permute.xlu0 %614
        %616 = vrot.lane.b32.xlu0 %v428, 8
        %v617 = vpop.permute.xlu0 %616
        %618 = vrot.lane.b32.xlu0 %v430, 8
        %v619 = vpop.permute.xlu0 %618
        %620 = vrot.lane.b32.xlu0 %v433, 8
        %v621 = vpop.permute.xlu0 %620
        %622 = vrot.lane.b32.xlu0 %v435, 8
        %v623 = vpop.permute.xlu0 %622
        %624 = vrot.lane.b32.xlu0 %v438, 8
        %v625 = vpop.permute.xlu0 %624
        %626 = vrot.lane.b32.xlu0 %v440, 8
        %v627 = vpop.permute.xlu0 %626
        %628 = vrot.lane.b32.xlu0 %v443, 8
        %v629 = vpop.permute.xlu0 %628
        %630 = vrot.lane.b32.xlu0 %v445, 8
        %v631 = vpop.permute.xlu0 %630
        %664 = vrot.lane.b32.xlu0 %v185, 12
        %v665 = vpop.permute.xlu0 %664
        %666 = vrot.lane.b32.xlu0 %v186, 12
        %v667 = vpop.permute.xlu0 %666
        %668 = vrot.lane.b32.xlu0 %v188, 12
        %v669 = vpop.permute.xlu0 %668
        %670 = vrot.lane.b32.xlu0 %v189, 12
        %v671 = vpop.permute.xlu0 %670
        %672 = vrot.lane.b32.xlu0 %v191, 12
        %v673 = vpop.permute.xlu0 %672
        %674 = vrot.lane.b32.xlu0 %v192, 12
        %v675 = vpop.permute.xlu0 %674
        %676 = vrot.lane.b32.xlu0 %v194, 12
        %v677 = vpop.permute.xlu0 %676
        %678 = vrot.lane.b32.xlu0 %v195, 12
        %v679 = vpop.permute.xlu0 %678
        %680 = vrot.lane.b32.xlu0 %v197, 12
        %v681 = vpop.permute.xlu0 %680
        %682 = vrot.lane.b32.xlu0 %v198, 12
        %v683 = vpop.permute.xlu0 %682
        %684 = vrot.lane.b32.xlu0 %v200, 12
        %v685 = vpop.permute.xlu0 %684
        %686 = vrot.lane.b32.xlu0 %v201, 12
        %v687 = vpop.permute.xlu0 %686
        %688 = vrot.lane.b32.xlu0 %v203, 12
        %v689 = vpop.permute.xlu0 %688
        %690 = vrot.lane.b32.xlu0 %v204, 12
        %v691 = vpop.permute.xlu0 %690
        %692 = vrot.lane.b32.xlu0 %v206, 12
        %v693 = vpop.permute.xlu0 %692
        %694 = vrot.lane.b32.xlu0 %v207, 12
        %v695 = vpop.permute.xlu0 %694
        %696 = vrot.lane.b32.xlu0 %v209, 12
        %v697 = vpop.permute.xlu0 %696
        %698 = vrot.lane.b32.xlu0 %v210, 12
        %v699 = vpop.permute.xlu0 %698
        %700 = vrot.lane.b32.xlu0 %v212, 12
        %v701 = vpop.permute.xlu0 %700
        %702 = vrot.lane.b32.xlu0 %v213, 12
        %v703 = vpop.permute.xlu0 %702
        %704 = vrot.lane.b32.xlu0 %v215, 12
        %v705 = vpop.permute.xlu0 %704
        %706 = vrot.lane.b32.xlu0 %v216, 12
        %v707 = vpop.permute.xlu0 %706
        %708 = vrot.lane.b32.xlu0 %v218, 12
        %v709 = vpop.permute.xlu0 %708
        %710 = vrot.lane.b32.xlu0 %v219, 12
        %v711 = vpop.permute.xlu0 %710
        %712 = vrot.lane.b32.xlu0 %v221, 12
        %v713 = vpop.permute.xlu0 %712
        %714 = vrot.lane.b32.xlu0 %v222, 12
        %v715 = vpop.permute.xlu0 %714
        %716 = vrot.lane.b32.xlu0 %v224, 12
        %v717 = vpop.permute.xlu0 %716
        %718 = vrot.lane.b32.xlu0 %v225, 12
        %v719 = vpop.permute.xlu0 %718
        %720 = vrot.lane.b32.xlu0 %v227, 12
        %v721 = vpop.permute.xlu0 %720
        %722 = vrot.lane.b32.xlu0 %v228, 12
        %v723 = vpop.permute.xlu0 %722
        %724 = vrot.lane.b32.xlu0 %v230, 12
        %v725 = vpop.permute.xlu0 %724
        %726 = vrot.lane.b32.xlu0 %v231, 12
        %v727 = vpop.permute.xlu0 %726
        %760 = vrot.lane.b32.xlu0 %v292, 16
        %v761 = vpop.permute.xlu0 %760
        %762 = vrot.lane.b32.xlu0 %v294, 16
        %v763 = vpop.permute.xlu0 %762
        %764 = vrot.lane.b32.xlu0 %v297, 16
        %v765 = vpop.permute.xlu0 %764
        %766 = vrot.lane.b32.xlu0 %v299, 16
        %v767 = vpop.permute.xlu0 %766
        %768 = vrot.lane.b32.xlu0 %v302, 16
        %v769 = vpop.permute.xlu0 %768
        %770 = vrot.lane.b32.xlu0 %v304, 16
        %v771 = vpop.permute.xlu0 %770
        %772 = vrot.lane.b32.xlu0 %v307, 16
        %v773 = vpop.permute.xlu0 %772
        %774 = vrot.lane.b32.xlu0 %v309, 16
        %v775 = vpop.permute.xlu0 %774
        %776 = vrot.lane.b32.xlu0 %v312, 16
        %v777 = vpop.permute.xlu0 %776
        %778 = vrot.lane.b32.xlu0 %v314, 16
        %v779 = vpop.permute.xlu0 %778
        %780 = vrot.lane.b32.xlu0 %v317, 16
        %v781 = vpop.permute.xlu0 %780
        %782 = vrot.lane.b32.xlu0 %v319, 16
        %v783 = vpop.permute.xlu0 %782
        %784 = vrot.lane.b32.xlu0 %v322, 16
        %v785 = vpop.permute.xlu0 %784
        %786 = vrot.lane.b32.xlu0 %v324, 16
        %v787 = vpop.permute.xlu0 %786
        %788 = vrot.lane.b32.xlu0 %v327, 16
        %v789 = vpop.permute.xlu0 %788
        %790 = vrot.lane.b32.xlu0 %v329, 16
        %v791 = vpop.permute.xlu0 %790
        %792 = vrot.lane.b32.xlu0 %v332, 16
        %v793 = vpop.permute.xlu0 %792
        %794 = vrot.lane.b32.xlu0 %v334, 16
        %v795 = vpop.permute.xlu0 %794
        %796 = vrot.lane.b32.xlu0 %v337, 16
        %v797 = vpop.permute.xlu0 %796
        %798 = vrot.lane.b32.xlu0 %v339, 16
        %v799 = vpop.permute.xlu0 %798
        %800 = vrot.lane.b32.xlu0 %v342, 16
        %v801 = vpop.permute.xlu0 %800
        %802 = vrot.lane.b32.xlu0 %v344, 16
        %v803 = vpop.permute.xlu0 %802
        %804 = vrot.lane.b32.xlu0 %v347, 16
        %v805 = vpop.permute.xlu0 %804
        %806 = vrot.lane.b32.xlu0 %v349, 16
        %v807 = vpop.permute.xlu0 %806
        %808 = vrot.lane.b32.xlu0 %v352, 16
        %v809 = vpop.permute.xlu0 %808
        %810 = vrot.lane.b32.xlu0 %v354, 16
        %v811 = vpop.permute.xlu0 %810
        %812 = vrot.lane.b32.xlu0 %v357, 16
        %v813 = vpop.permute.xlu0 %812
        %814 = vrot.lane.b32.xlu0 %v359, 16
        %v815 = vpop.permute.xlu0 %814
        %816 = vrot.lane.b32.xlu0 %v362, 16
        %v817 = vpop.permute.xlu0 %816
        %818 = vrot.lane.b32.xlu0 %v364, 16
        %v819 = vpop.permute.xlu0 %818
        %820 = vrot.lane.b32.xlu0 %v451, 16
        %v821 = vpop.permute.xlu0 %820
        %822 = vrot.lane.b32.xlu0 %v453, 16
        %v823 = vpop.permute.xlu0 %822
        %856 = vrot.lane.b32.xlu0 %v373, 20
        %v857 = vpop.permute.xlu0 %856
        %858 = vrot.lane.b32.xlu0 %v375, 20
        %v859 = vpop.permute.xlu0 %858
        %860 = vrot.lane.b32.xlu0 %v378, 20
        %v861 = vpop.permute.xlu0 %860
        %862 = vrot.lane.b32.xlu0 %v380, 20
        %v863 = vpop.permute.xlu0 %862
        %864 = vrot.lane.b32.xlu0 %v383, 20
        %v865 = vpop.permute.xlu0 %864
        %866 = vrot.lane.b32.xlu0 %v385, 20
        %v867 = vpop.permute.xlu0 %866
        %868 = vrot.lane.b32.xlu0 %v388, 20
        %v869 = vpop.permute.xlu0 %868
        %870 = vrot.lane.b32.xlu0 %v390, 20
        %v871 = vpop.permute.xlu0 %870
        %872 = vrot.lane.b32.xlu0 %v393, 20
        %v873 = vpop.permute.xlu0 %872
        %874 = vrot.lane.b32.xlu0 %v395, 20
        %v875 = vpop.permute.xlu0 %874
        %876 = vrot.lane.b32.xlu0 %v398, 20
        %v877 = vpop.permute.xlu0 %876
        %878 = vrot.lane.b32.xlu0 %v400, 20
        %v879 = vpop.permute.xlu0 %878
        %880 = vrot.lane.b32.xlu0 %v403, 20
        %v881 = vpop.permute.xlu0 %880
        %882 = vrot.lane.b32.xlu0 %v405, 20
        %v883 = vpop.permute.xlu0 %882
        %884 = vrot.lane.b32.xlu0 %v408, 20
        %v885 = vpop.permute.xlu0 %884
        %886 = vrot.lane.b32.xlu0 %v410, 20
        %v887 = vpop.permute.xlu0 %886
        %888 = vrot.lane.b32.xlu0 %v413, 20
        %v889 = vpop.permute.xlu0 %888
        %890 = vrot.lane.b32.xlu0 %v415, 20
        %v891 = vpop.permute.xlu0 %890
        %892 = vrot.lane.b32.xlu0 %v418, 20
        %v893 = vpop.permute.xlu0 %892
        %894 = vrot.lane.b32.xlu0 %v420, 20
        %v895 = vpop.permute.xlu0 %894
        %896 = vrot.lane.b32.xlu0 %v423, 20
        %v897 = vpop.permute.xlu0 %896
        %898 = vrot.lane.b32.xlu0 %v425, 20
        %v899 = vpop.permute.xlu0 %898
        %900 = vrot.lane.b32.xlu0 %v428, 20
        %v901 = vpop.permute.xlu0 %900
        %902 = vrot.lane.b32.xlu0 %v430, 20
        %v903 = vpop.permute.xlu0 %902
        %904 = vrot.lane.b32.xlu0 %v433, 20
        %v905 = vpop.permute.xlu0 %904
        %906 = vrot.lane.b32.xlu0 %v435, 20
        %v907 = vpop.permute.xlu0 %906
        %908 = vrot.lane.b32.xlu0 %v438, 20
        %v909 = vpop.permute.xlu0 %908
        %910 = vrot.lane.b32.xlu0 %v440, 20
        %v911 = vpop.permute.xlu0 %910
        %912 = vrot.lane.b32.xlu0 %v443, 20
        %v913 = vpop.permute.xlu0 %912
        %914 = vrot.lane.b32.xlu0 %v445, 20
        %v915 = vpop.permute.xlu0 %914
        %916 = vrot.lane.b32.xlu0 %v456, 20
        %v917 = vpop.permute.xlu0 %916
        %918 = vrot.lane.b32.xlu0 %v458, 20
        %v919 = vpop.permute.xlu0 %918
        %952 = vrot.lane.b32.xlu0 %v188, 24
        %v953 = vpop.permute.xlu0 %952
        %954 = vrot.lane.b32.xlu0 %v189, 24
        %v955 = vpop.permute.xlu0 %954
        %956 = vrot.lane.b32.xlu0 %v191, 24
        %v957 = vpop.permute.xlu0 %956
        %958 = vrot.lane.b32.xlu0 %v192, 24
        %v959 = vpop.permute.xlu0 %958
        %960 = vrot.lane.b32.xlu0 %v194, 24
        %v961 = vpop.permute.xlu0 %960
        %962 = vrot.lane.b32.xlu0 %v195, 24
        %v963 = vpop.permute.xlu0 %962
        %964 = vrot.lane.b32.xlu0 %v197, 24
        %v965 = vpop.permute.xlu0 %964
        %966 = vrot.lane.b32.xlu0 %v198, 24
        %v967 = vpop.permute.xlu0 %966
        %968 = vrot.lane.b32.xlu0 %v200, 24
        %v969 = vpop.permute.xlu0 %968
        %970 = vrot.lane.b32.xlu0 %v201, 24
        %v971 = vpop.permute.xlu0 %970
        %972 = vrot.lane.b32.xlu0 %v203, 24
        %v973 = vpop.permute.xlu0 %972
        %974 = vrot.lane.b32.xlu0 %v204, 24
        %v975 = vpop.permute.xlu0 %974
        %976 = vrot.lane.b32.xlu0 %v206, 24
        %v977 = vpop.permute.xlu0 %976
        %978 = vrot.lane.b32.xlu0 %v207, 24
        %v979 = vpop.permute.xlu0 %978
        %980 = vrot.lane.b32.xlu0 %v209, 24
        %v981 = vpop.permute.xlu0 %980
        %982 = vrot.lane.b32.xlu0 %v210, 24
        %v983 = vpop.permute.xlu0 %982
        %984 = vrot.lane.b32.xlu0 %v212, 24
        %v985 = vpop.permute.xlu0 %984
        %986 = vrot.lane.b32.xlu0 %v213, 24
        %v987 = vpop.permute.xlu0 %986
        %988 = vrot.lane.b32.xlu0 %v215, 24
        %v989 = vpop.permute.xlu0 %988
        %990 = vrot.lane.b32.xlu0 %v216, 24
        %v991 = vpop.permute.xlu0 %990
        %992 = vrot.lane.b32.xlu0 %v218, 24
        %v993 = vpop.permute.xlu0 %992
        %994 = vrot.lane.b32.xlu0 %v219, 24
        %v995 = vpop.permute.xlu0 %994
        %996 = vrot.lane.b32.xlu0 %v221, 24
        %v997 = vpop.permute.xlu0 %996
        %998 = vrot.lane.b32.xlu0 %v222, 24
        %v999 = vpop.permute.xlu0 %998
        %1000 = vrot.lane.b32.xlu0 %v224, 24
        %v1001 = vpop.permute.xlu0 %1000
        %1002 = vrot.lane.b32.xlu0 %v225, 24
        %v1003 = vpop.permute.xlu0 %1002
        %1004 = vrot.lane.b32.xlu0 %v227, 24
        %v1005 = vpop.permute.xlu0 %1004
        %1006 = vrot.lane.b32.xlu0 %v228, 24
        %v1007 = vpop.permute.xlu0 %1006
        %1008 = vrot.lane.b32.xlu0 %v230, 24
        %v1009 = vpop.permute.xlu0 %1008
        %1010 = vrot.lane.b32.xlu0 %v231, 24
        %v1011 = vpop.permute.xlu0 %1010
        %1012 = vrot.lane.b32.xlu0 %v233, 24
        %v1013 = vpop.permute.xlu0 %1012
        %1014 = vrot.lane.b32.xlu0 %v234, 24
        %v1015 = vpop.permute.xlu0 %1014
        %1048 = vrot.lane.b32.xlu0 %v297, 28
        %v1049 = vpop.permute.xlu0 %1048
        %1050 = vrot.lane.b32.xlu0 %v299, 28
        %v1051 = vpop.permute.xlu0 %1050
        %1052 = vrot.lane.b32.xlu0 %v302, 28
        %v1053 = vpop.permute.xlu0 %1052
        %1054 = vrot.lane.b32.xlu0 %v304, 28
        %v1055 = vpop.permute.xlu0 %1054
        %1056 = vrot.lane.b32.xlu0 %v307, 28
        %v1057 = vpop.permute.xlu0 %1056
        %1058 = vrot.lane.b32.xlu0 %v309, 28
        %v1059 = vpop.permute.xlu0 %1058
        %1060 = vrot.lane.b32.xlu0 %v312, 28
        %v1061 = vpop.permute.xlu0 %1060
        %1062 = vrot.lane.b32.xlu0 %v314, 28
        %v1063 = vpop.permute.xlu0 %1062
        %1064 = vrot.lane.b32.xlu0 %v317, 28
        %v1065 = vpop.permute.xlu0 %1064
        %1066 = vrot.lane.b32.xlu0 %v319, 28
        %v1067 = vpop.permute.xlu0 %1066
        %1068 = vrot.lane.b32.xlu0 %v322, 28
        %v1069 = vpop.permute.xlu0 %1068
        %1070 = vrot.lane.b32.xlu0 %v324, 28
        %v1071 = vpop.permute.xlu0 %1070
        %1072 = vrot.lane.b32.xlu0 %v327, 28
        %v1073 = vpop.permute.xlu0 %1072
        %1074 = vrot.lane.b32.xlu0 %v329, 28
        %v1075 = vpop.permute.xlu0 %1074
        %1076 = vrot.lane.b32.xlu0 %v332, 28
        %v1077 = vpop.permute.xlu0 %1076
        %1078 = vrot.lane.b32.xlu0 %v334, 28
        %v1079 = vpop.permute.xlu0 %1078
        %1080 = vrot.lane.b32.xlu0 %v337, 28
        %v1081 = vpop.permute.xlu0 %1080
        %1082 = vrot.lane.b32.xlu0 %v339, 28
        %v1083 = vpop.permute.xlu0 %1082
        %1084 = vrot.lane.b32.xlu0 %v342, 28
        %v1085 = vpop.permute.xlu0 %1084
        %1086 = vrot.lane.b32.xlu0 %v344, 28
        %v1087 = vpop.permute.xlu0 %1086
        %1088 = vrot.lane.b32.xlu0 %v347, 28
        %v1089 = vpop.permute.xlu0 %1088
        %1090 = vrot.lane.b32.xlu0 %v349, 28
        %v1091 = vpop.permute.xlu0 %1090
        %1092 = vrot.lane.b32.xlu0 %v352, 28
        %v1093 = vpop.permute.xlu0 %1092
        %1094 = vrot.lane.b32.xlu0 %v354, 28
        %v1095 = vpop.permute.xlu0 %1094
        %1096 = vrot.lane.b32.xlu0 %v357, 28
        %v1097 = vpop.permute.xlu0 %1096
        %1098 = vrot.lane.b32.xlu0 %v359, 28
        %v1099 = vpop.permute.xlu0 %1098
        %1100 = vrot.lane.b32.xlu0 %v362, 28
        %v1101 = vpop.permute.xlu0 %1100
        %1102 = vrot.lane.b32.xlu0 %v364, 28
        %v1103 = vpop.permute.xlu0 %1102
        %1104 = vrot.lane.b32.xlu0 %v451, 28
        %v1105 = vpop.permute.xlu0 %1104
        %1106 = vrot.lane.b32.xlu0 %v453, 28
        %v1107 = vpop.permute.xlu0 %1106
        %1108 = vrot.lane.b32.xlu0 %v464, 28
        %v1109 = vpop.permute.xlu0 %1108
        %1110 = vrot.lane.b32.xlu0 %v466, 28
        %v1111 = vpop.permute.xlu0 %1110
        %1144 = vrot.lane.b32.xlu0 %v378, 32
        %v1145 = vpop.permute.xlu0 %1144
        %1146 = vrot.lane.b32.xlu0 %v380, 32
        %v1147 = vpop.permute.xlu0 %1146
        %1148 = vrot.lane.b32.xlu0 %v383, 32
        %v1149 = vpop.permute.xlu0 %1148
        %1150 = vrot.lane.b32.xlu0 %v385, 32
        %v1151 = vpop.permute.xlu0 %1150
        %1152 = vrot.lane.b32.xlu0 %v388, 32
        %v1153 = vpop.permute.xlu0 %1152
        %1154 = vrot.lane.b32.xlu0 %v390, 32
        %v1155 = vpop.permute.xlu0 %1154
        %1156 = vrot.lane.b32.xlu0 %v393, 32
        %v1157 = vpop.permute.xlu0 %1156
        %1158 = vrot.lane.b32.xlu0 %v395, 32
        %v1159 = vpop.permute.xlu0 %1158
        %1160 = vrot.lane.b32.xlu0 %v398, 32
        %v1161 = vpop.permute.xlu0 %1160
        %1162 = vrot.lane.b32.xlu0 %v400, 32
        %v1163 = vpop.permute.xlu0 %1162
        %1164 = vrot.lane.b32.xlu0 %v403, 32
        %v1165 = vpop.permute.xlu0 %1164
        %1166 = vrot.lane.b32.xlu0 %v405, 32
        %v1167 = vpop.permute.xlu0 %1166
        %1168 = vrot.lane.b32.xlu0 %v408, 32
        %v1169 = vpop.permute.xlu0 %1168
        %1170 = vrot.lane.b32.xlu0 %v410, 32
        %v1171 = vpop.permute.xlu0 %1170
        %1172 = vrot.lane.b32.xlu0 %v413, 32
        %v1173 = vpop.permute.xlu0 %1172
        %1174 = vrot.lane.b32.xlu0 %v415, 32
        %v1175 = vpop.permute.xlu0 %1174
        %1176 = vrot.lane.b32.xlu0 %v418, 32
        %v1177 = vpop.permute.xlu0 %1176
        %1178 = vrot.lane.b32.xlu0 %v420, 32
        %v1179 = vpop.permute.xlu0 %1178
        %1180 = vrot.lane.b32.xlu0 %v423, 32
        %v1181 = vpop.permute.xlu0 %1180
        %1182 = vrot.lane.b32.xlu0 %v425, 32
        %v1183 = vpop.permute.xlu0 %1182
        %1184 = vrot.lane.b32.xlu0 %v428, 32
        %v1185 = vpop.permute.xlu0 %1184
        %1186 = vrot.lane.b32.xlu0 %v430, 32
        %v1187 = vpop.permute.xlu0 %1186
        %1188 = vrot.lane.b32.xlu0 %v433, 32
        %v1189 = vpop.permute.xlu0 %1188
        %1190 = vrot.lane.b32.xlu0 %v435, 32
        %v1191 = vpop.permute.xlu0 %1190
        %1192 = vrot.lane.b32.xlu0 %v438, 32
        %v1193 = vpop.permute.xlu0 %1192
        %1194 = vrot.lane.b32.xlu0 %v440, 32
        %v1195 = vpop.permute.xlu0 %1194
        %1196 = vrot.lane.b32.xlu0 %v443, 32
        %v1197 = vpop.permute.xlu0 %1196
        %1198 = vrot.lane.b32.xlu0 %v445, 32
        %v1199 = vpop.permute.xlu0 %1198
        %1200 = vrot.lane.b32.xlu0 %v456, 32
        %v1201 = vpop.permute.xlu0 %1200
        %1202 = vrot.lane.b32.xlu0 %v458, 32
        %v1203 = vpop.permute.xlu0 %1202
        %1204 = vrot.lane.b32.xlu0 %v469, 32
        %v1205 = vpop.permute.xlu0 %1204
        %1206 = vrot.lane.b32.xlu0 %v471, 32
        %v1207 = vpop.permute.xlu0 %1206
        %vm1240 = vcmask 31744
        %v1241 = vsel %vm1240, %v182, %v473
        %v1242 = vsel %vm1240, %v183, %v475
        %v1243 = vsel %vm1240, %v185, %v477
        %v1244 = vsel %vm1240, %v186, %v479
        %v1245 = vsel %vm1240, %v188, %v481
        %v1246 = vsel %vm1240, %v189, %v483
        %v1247 = vsel %vm1240, %v191, %v485
        %v1248 = vsel %vm1240, %v192, %v487
        %v1249 = vsel %vm1240, %v194, %v489
        %v1250 = vsel %vm1240, %v195, %v491
        %v1251 = vsel %vm1240, %v197, %v493
        %v1252 = vsel %vm1240, %v198, %v495
        %v1253 = vsel %vm1240, %v200, %v497
        %v1254 = vsel %vm1240, %v201, %v499
        %v1255 = vsel %vm1240, %v203, %v501
        %v1256 = vsel %vm1240, %v204, %v503
        %v1257 = vsel %vm1240, %v206, %v505
        %v1258 = vsel %vm1240, %v207, %v507
        %v1259 = vsel %vm1240, %v209, %v509
        %v1260 = vsel %vm1240, %v210, %v511
        %v1261 = vsel %vm1240, %v212, %v513
        %v1262 = vsel %vm1240, %v213, %v515
        %v1263 = vsel %vm1240, %v215, %v517
        %v1264 = vsel %vm1240, %v216, %v519
        %v1265 = vsel %vm1240, %v218, %v521
        %v1266 = vsel %vm1240, %v219, %v523
        %v1267 = vsel %vm1240, %v221, %v525
        %v1268 = vsel %vm1240, %v222, %v527
        %v1269 = vsel %vm1240, %v224, %v529
        %v1270 = vsel %vm1240, %v225, %v531
        %v1271 = vsel %vm1240, %v227, %v533
        %v1272 = vsel %vm1240, %v228, %v535
        %vm1273 = vcmask 64512
        %v1274 = vsel %vm1273, %v1241, %v569
        %v1275 = vsel %vm1273, %v1242, %v571
        %v1276 = vsel %vm1273, %v1243, %v573
        %v1277 = vsel %vm1273, %v1244, %v575
        %v1278 = vsel %vm1273, %v1245, %v577
        %v1279 = vsel %vm1273, %v1246, %v579
        %v1280 = vsel %vm1273, %v1247, %v581
        %v1281 = vsel %vm1273, %v1248, %v583
        %v1282 = vsel %vm1273, %v1249, %v585
        %v1283 = vsel %vm1273, %v1250, %v587
        %v1284 = vsel %vm1273, %v1251, %v589
        %v1285 = vsel %vm1273, %v1252, %v591
        %v1286 = vsel %vm1273, %v1253, %v593
        %v1287 = vsel %vm1273, %v1254, %v595
        %v1288 = vsel %vm1273, %v1255, %v597
        %v1289 = vsel %vm1273, %v1256, %v599
        %v1290 = vsel %vm1273, %v1257, %v601
        %v1291 = vsel %vm1273, %v1258, %v603
        %v1292 = vsel %vm1273, %v1259, %v605
        %v1293 = vsel %vm1273, %v1260, %v607
        %v1294 = vsel %vm1273, %v1261, %v609
        %v1295 = vsel %vm1273, %v1262, %v611
        %v1296 = vsel %vm1273, %v1263, %v613
        %v1297 = vsel %vm1273, %v1264, %v615
        %v1298 = vsel %vm1273, %v1265, %v617
        %v1299 = vsel %vm1273, %v1266, %v619
        %v1300 = vsel %vm1273, %v1267, %v621
        %v1301 = vsel %vm1273, %v1268, %v623
        %v1302 = vsel %vm1273, %v1269, %v625
        %v1303 = vsel %vm1273, %v1270, %v627
        %v1304 = vsel %vm1273, %v1271, %v629
        %v1305 = vsel %vm1273, %v1272, %v631
        %vm1306 = vcmask 97280
        %v1307 = vsel %vm1306, %v1274, %v665
        %v1308 = vsel %vm1306, %v1275, %v667
        %v1309 = vsel %vm1306, %v1276, %v669
        %v1310 = vsel %vm1306, %v1277, %v671
        %v1311 = vsel %vm1306, %v1278, %v673
        %v1312 = vsel %vm1306, %v1279, %v675
        %v1313 = vsel %vm1306, %v1280, %v677
        %v1314 = vsel %vm1306, %v1281, %v679
        %v1315 = vsel %vm1306, %v1282, %v681
        %v1316 = vsel %vm1306, %v1283, %v683
        %v1317 = vsel %vm1306, %v1284, %v685
        %v1318 = vsel %vm1306, %v1285, %v687
        %v1319 = vsel %vm1306, %v1286, %v689
        %v1320 = vsel %vm1306, %v1287, %v691
        %v1321 = vsel %vm1306, %v1288, %v693
        %v1322 = vsel %vm1306, %v1289, %v695
        %v1323 = vsel %vm1306, %v1290, %v697
        %v1324 = vsel %vm1306, %v1291, %v699
        %v1325 = vsel %vm1306, %v1292, %v701
        %v1326 = vsel %vm1306, %v1293, %v703
        %v1327 = vsel %vm1306, %v1294, %v705
        %v1328 = vsel %vm1306, %v1295, %v707
        %v1329 = vsel %vm1306, %v1296, %v709
        %v1330 = vsel %vm1306, %v1297, %v711
        %v1331 = vsel %vm1306, %v1298, %v713
        %v1332 = vsel %vm1306, %v1299, %v715
        %v1333 = vsel %vm1306, %v1300, %v717
        %v1334 = vsel %vm1306, %v1301, %v719
        %v1335 = vsel %vm1306, %v1302, %v721
        %v1336 = vsel %vm1306, %v1303, %v723
        %v1337 = vsel %vm1306, %v1304, %v725
        %v1338 = vsel %vm1306, %v1305, %v727
        %vm1339 = vcmask 130048
        %v1340 = vsel %vm1339, %v1307, %v761
        %v1341 = vsel %vm1339, %v1308, %v763
        %v1342 = vsel %vm1339, %v1309, %v765
        %v1343 = vsel %vm1339, %v1310, %v767
        %v1344 = vsel %vm1339, %v1311, %v769
        %v1345 = vsel %vm1339, %v1312, %v771
        %v1346 = vsel %vm1339, %v1313, %v773
        %v1347 = vsel %vm1339, %v1314, %v775
        %v1348 = vsel %vm1339, %v1315, %v777
        %v1349 = vsel %vm1339, %v1316, %v779
        %v1350 = vsel %vm1339, %v1317, %v781
        %v1351 = vsel %vm1339, %v1318, %v783
        %v1352 = vsel %vm1339, %v1319, %v785
        %v1353 = vsel %vm1339, %v1320, %v787
        %v1354 = vsel %vm1339, %v1321, %v789
        %v1355 = vsel %vm1339, %v1322, %v791
        %v1356 = vsel %vm1339, %v1323, %v793
        %v1357 = vsel %vm1339, %v1324, %v795
        %v1358 = vsel %vm1339, %v1325, %v797
        %v1359 = vsel %vm1339, %v1326, %v799
        %v1360 = vsel %vm1339, %v1327, %v801
        %v1361 = vsel %vm1339, %v1328, %v803
        %v1362 = vsel %vm1339, %v1329, %v805
        %v1363 = vsel %vm1339, %v1330, %v807
        %v1364 = vsel %vm1339, %v1331, %v809
        %v1365 = vsel %vm1339, %v1332, %v811
        %v1366 = vsel %vm1339, %v1333, %v813
        %v1367 = vsel %vm1339, %v1334, %v815
        %v1368 = vsel %vm1339, %v1335, %v817
        %v1369 = vsel %vm1339, %v1336, %v819
        %v1370 = vsel %vm1339, %v1337, %v821
        %v1371 = vsel %vm1339, %v1338, %v823
        %vm1372 = vcmask 162816
        %v1373 = vsel %vm1372, %v1340, %v857
        %v1374 = vsel %vm1372, %v1341, %v859
        %v1375 = vsel %vm1372, %v1342, %v861
        %v1376 = vsel %vm1372, %v1343, %v863
        %v1377 = vsel %vm1372, %v1344, %v865
        %v1378 = vsel %vm1372, %v1345, %v867
        %v1379 = vsel %vm1372, %v1346, %v869
        %v1380 = vsel %vm1372, %v1347, %v871
        %v1381 = vsel %vm1372, %v1348, %v873
        %v1382 = vsel %vm1372, %v1349, %v875
        %v1383 = vsel %vm1372, %v1350, %v877
        %v1384 = vsel %vm1372, %v1351, %v879
        %v1385 = vsel %vm1372, %v1352, %v881
        %v1386 = vsel %vm1372, %v1353, %v883
        %v1387 = vsel %vm1372, %v1354, %v885
        %v1388 = vsel %vm1372, %v1355, %v887
        %v1389 = vsel %vm1372, %v1356, %v889
        %v1390 = vsel %vm1372, %v1357, %v891
        %v1391 = vsel %vm1372, %v1358, %v893
        %v1392 = vsel %vm1372, %v1359, %v895
        %v1393 = vsel %vm1372, %v1360, %v897
        %v1394 = vsel %vm1372, %v1361, %v899
        %v1395 = vsel %vm1372, %v1362, %v901
        %v1396 = vsel %vm1372, %v1363, %v903
        %v1397 = vsel %vm1372, %v1364, %v905
        %v1398 = vsel %vm1372, %v1365, %v907
        %v1399 = vsel %vm1372, %v1366, %v909
        %v1400 = vsel %vm1372, %v1367, %v911
        %v1401 = vsel %vm1372, %v1368, %v913
        %v1402 = vsel %vm1372, %v1369, %v915
        %v1403 = vsel %vm1372, %v1370, %v917
        %v1404 = vsel %vm1372, %v1371, %v919
        %vm1405 = vcmask 195584
        %v1406 = vsel %vm1405, %v1373, %v953
        %v1407 = vsel %vm1405, %v1374, %v955
        %v1408 = vsel %vm1405, %v1375, %v957
        %v1409 = vsel %vm1405, %v1376, %v959
        %v1410 = vsel %vm1405, %v1377, %v961
        %v1411 = vsel %vm1405, %v1378, %v963
        %v1412 = vsel %vm1405, %v1379, %v965
        %v1413 = vsel %vm1405, %v1380, %v967
        %v1414 = vsel %vm1405, %v1381, %v969
        %v1415 = vsel %vm1405, %v1382, %v971
        %v1416 = vsel %vm1405, %v1383, %v973
        %v1417 = vsel %vm1405, %v1384, %v975
        %v1418 = vsel %vm1405, %v1385, %v977
        %v1419 = vsel %vm1405, %v1386, %v979
        %v1420 = vsel %vm1405, %v1387, %v981
        %v1421 = vsel %vm1405, %v1388, %v983
        %v1422 = vsel %vm1405, %v1389, %v985
        %v1423 = vsel %vm1405, %v1390, %v987
        %v1424 = vsel %vm1405, %v1391, %v989
        %v1425 = vsel %vm1405, %v1392, %v991
        %v1426 = vsel %vm1405, %v1393, %v993
        %v1427 = vsel %vm1405, %v1394, %v995
        %v1428 = vsel %vm1405, %v1395, %v997
        %v1429 = vsel %vm1405, %v1396, %v999
        %v1430 = vsel %vm1405, %v1397, %v1001
        %v1431 = vsel %vm1405, %v1398, %v1003
        %v1432 = vsel %vm1405, %v1399, %v1005
        %v1433 = vsel %vm1405, %v1400, %v1007
        %v1434 = vsel %vm1405, %v1401, %v1009
        %v1435 = vsel %vm1405, %v1402, %v1011
        %v1436 = vsel %vm1405, %v1403, %v1013
        %v1437 = vsel %vm1405, %v1404, %v1015
        %vm1438 = vcmask 228352
        %v1439 = vsel %vm1438, %v1406, %v1049
        %v1440 = vsel %vm1438, %v1407, %v1051
        %v1441 = vsel %vm1438, %v1408, %v1053
        %v1442 = vsel %vm1438, %v1409, %v1055
        %v1443 = vsel %vm1438, %v1410, %v1057
        %v1444 = vsel %vm1438, %v1411, %v1059
        %v1445 = vsel %vm1438, %v1412, %v1061
        %v1446 = vsel %vm1438, %v1413, %v1063
        %v1447 = vsel %vm1438, %v1414, %v1065
        %v1448 = vsel %vm1438, %v1415, %v1067
        %v1449 = vsel %vm1438, %v1416, %v1069
        %v1450 = vsel %vm1438, %v1417, %v1071
        %v1451 = vsel %vm1438, %v1418, %v1073
        %v1452 = vsel %vm1438, %v1419, %v1075
        %v1453 = vsel %vm1438, %v1420, %v1077
        %v1454 = vsel %vm1438, %v1421, %v1079
        %v1455 = vsel %vm1438, %v1422, %v1081
        %v1456 = vsel %vm1438, %v1423, %v1083
        %v1457 = vsel %vm1438, %v1424, %v1085
        %v1458 = vsel %vm1438, %v1425, %v1087
        %v1459 = vsel %vm1438, %v1426, %v1089
        %v1460 = vsel %vm1438, %v1427, %v1091
        %v1461 = vsel %vm1438, %v1428, %v1093
        %v1462 = vsel %vm1438, %v1429, %v1095
        %v1463 = vsel %vm1438, %v1430, %v1097
        %v1464 = vsel %vm1438, %v1431, %v1099
        %v1465 = vsel %vm1438, %v1432, %v1101
        %v1466 = vsel %vm1438, %v1433, %v1103
        %v1467 = vsel %vm1438, %v1434, %v1105
        %v1468 = vsel %vm1438, %v1435, %v1107
        %v1469 = vsel %vm1438, %v1436, %v1109
        %v1470 = vsel %vm1438, %v1437, %v1111
        %vm1471 = vcmask 261120
        %v1472 = vsel %vm1471, %v1439, %v1145
        %v1473 = vsel %vm1471, %v1440, %v1147
        %v1474 = vsel %vm1471, %v1441, %v1149
        %v1475 = vsel %vm1471, %v1442, %v1151
        %v1476 = vsel %vm1471, %v1443, %v1153
        %v1477 = vsel %vm1471, %v1444, %v1155
        %v1478 = vsel %vm1471, %v1445, %v1157
        %v1479 = vsel %vm1471, %v1446, %v1159
        %v1480 = vsel %vm1471, %v1447, %v1161
        %v1481 = vsel %vm1471, %v1448, %v1163
        %v1482 = vsel %vm1471, %v1449, %v1165
        %v1483 = vsel %vm1471, %v1450, %v1167
        %v1484 = vsel %vm1471, %v1451, %v1169
        %v1485 = vsel %vm1471, %v1452, %v1171
        %v1486 = vsel %vm1471, %v1453, %v1173
        %v1487 = vsel %vm1471, %v1454, %v1175
        %v1488 = vsel %vm1471, %v1455, %v1177
        %v1489 = vsel %vm1471, %v1456, %v1179
        %v1490 = vsel %vm1471, %v1457, %v1181
        %v1491 = vsel %vm1471, %v1458, %v1183
        %v1492 = vsel %vm1471, %v1459, %v1185
        %v1493 = vsel %vm1471, %v1460, %v1187
        %v1494 = vsel %vm1471, %v1461, %v1189
        %v1495 = vsel %vm1471, %v1462, %v1191
        %v1496 = vsel %vm1471, %v1463, %v1193
        %v1497 = vsel %vm1471, %v1464, %v1195
        %v1498 = vsel %vm1471, %v1465, %v1197
        %v1499 = vsel %vm1471, %v1466, %v1199
        %v1500 = vsel %vm1471, %v1467, %v1201
        %v1501 = vsel %vm1471, %v1468, %v1203
        %v1502 = vsel %vm1471, %v1469, %v1205
        %v1503 = vsel %vm1471, %v1470, %v1207
        %v1504 = vld [vmem:[%s1] sm:$0xff]
        %v1505 = vld [vmem:[%s1 + $0x8] sm:$0xff]
        %v1506 = vld [vmem:[%s1 + $0x10] sm:$0xff]
        %v1507 = vld [vmem:[%s1 + $0x18] sm:$0xff]
        %v1508 = vld [vmem:[%s1 + $0x20] sm:$0xf]
        %vm1509 = vcmask 293888
        %v1511 = vsel %vm1509, %v1472, 0
        %v1514 = vsel %vm1509, %v1473, 0
        %v1517 = vsel %vm1509, %v1474, 0
        %v1520 = vsel %vm1509, %v1475, 0
        %v1523 = vsel %vm1509, %v1476, 0
        %v1526 = vsel %vm1509, %v1477, 0
        %v1529 = vsel %vm1509, %v1478, 0
        %v1532 = vsel %vm1509, %v1479, 0
        %v1535 = vsel %vm1509, %v1480, 0
        %v1538 = vsel %vm1509, %v1481, 0
        %v1541 = vsel %vm1509, %v1482, 0
        %v1544 = vsel %vm1509, %v1483, 0
        %v1547 = vsel %vm1509, %v1484, 0
        %v1550 = vsel %vm1509, %v1485, 0
        %v1553 = vsel %vm1509, %v1486, 0
        %v1556 = vsel %vm1509, %v1487, 0
        %v1559 = vsel %vm1509, %v1488, 0
        %v1562 = vsel %vm1509, %v1489, 0
        %v1565 = vsel %vm1509, %v1490, 0
        %v1568 = vsel %vm1509, %v1491, 0
        %v1571 = vsel %vm1509, %v1492, 0
        %v1574 = vsel %vm1509, %v1493, 0
        %v1577 = vsel %vm1509, %v1494, 0
        %v1580 = vsel %vm1509, %v1495, 0
        %v1583 = vsel %vm1509, %v1496, 0
        %v1586 = vsel %vm1509, %v1497, 0
        %v1589 = vsel %vm1509, %v1498, 0
        %v1592 = vsel %vm1509, %v1499, 0
        %v1595 = vsel %vm1509, %v1500, 0
        %v1598 = vsel %vm1509, %v1501, 0
        %v1601 = vsel %vm1509, %v1502, 0
        %v1604 = vsel %vm1509, %v1503, 0
        %vm1606 = vcmask 1043456
        %v1608 = vsel %vm1606, %v1508, 0
        %1610 = vmatpush.msra.mxu0 0.0
        %1611 = vmatpush.msra.mxu0 0.0
        %1612 = vmatpush.msra.mxu0 0.0
        %1613 = vmatpush.msra.mxu0 0.0
        %1614 = vmatpush.msra.mxu0 0.0
        %1615 = vmatpush.msra.mxu0 0.0
        %1616 = vmatpush.msra.mxu0 0.0
        %1617 = vmatpush.msra.mxu0 0.0
        %1618 = vmatpush.msra.mxu0 0.0
        %1619 = vmatpush.msra.mxu0 0.0
        %1620 = vmatpush.msra.mxu0 0.0
        %1621 = vmatpush.msra.mxu0 %v1608
        %1622 = vmatpush.msra.mxu0 %v1507
        %1623 = vmatpush.msra.mxu0 %v1506
        %1624 = vmatpush.msra.mxu0 %v1505
        %1625 = vmatpush.msra.mxu0 %v1504
        %1626 = vmatmul.f32.gmra.mxu0 %v1511
        %v1627 = vpop.f32.mrf.mxu0
        %v1628 = vadd.f32 0.0, %v1627
        %1629 = vmatmul.f32.gmra.mxu0 %v1514
        %v1630 = vpop.f32.mrf.mxu0
        %v1631 = vadd.f32 0.0, %v1630
        %1632 = vmatmul.f32.gmra.mxu0 %v1517
        %v1633 = vpop.f32.mrf.mxu0
        %v1634 = vadd.f32 0.0, %v1633
        %1635 = vmatmul.f32.gmra.mxu0 %v1520
        %v1636 = vpop.f32.mrf.mxu0
        %v1637 = vadd.f32 0.0, %v1636
        %1638 = vmatmul.f32.gmra.mxu0 %v1523
        %v1639 = vpop.f32.mrf.mxu0
        %v1640 = vadd.f32 0.0, %v1639
        %1641 = vmatmul.f32.gmra.mxu0 %v1526
        %v1642 = vpop.f32.mrf.mxu0
        %v1643 = vadd.f32 0.0, %v1642
        %1644 = vmatmul.f32.gmra.mxu0 %v1529
        %v1645 = vpop.f32.mrf.mxu0
        %v1646 = vadd.f32 0.0, %v1645
        %1647 = vmatmul.f32.gmra.mxu0 %v1532
        %v1648 = vpop.f32.mrf.mxu0
        %v1649 = vadd.f32 0.0, %v1648
        %1650 = vmatmul.f32.gmra.mxu0 %v1535
        %v1651 = vpop.f32.mrf.mxu0
        %v1652 = vadd.f32 0.0, %v1651
        %1653 = vmatmul.f32.gmra.mxu0 %v1538
        %v1654 = vpop.f32.mrf.mxu0
        %v1655 = vadd.f32 0.0, %v1654
        %1656 = vmatmul.f32.gmra.mxu0 %v1541
        %v1657 = vpop.f32.mrf.mxu0
        %v1658 = vadd.f32 0.0, %v1657
        %1659 = vmatmul.f32.gmra.mxu0 %v1544
        %v1660 = vpop.f32.mrf.mxu0
        %v1661 = vadd.f32 0.0, %v1660
        %1662 = vmatmul.f32.gmra.mxu0 %v1547
        %v1663 = vpop.f32.mrf.mxu0
        %v1664 = vadd.f32 0.0, %v1663
        %1665 = vmatmul.f32.gmra.mxu0 %v1550
        %v1666 = vpop.f32.mrf.mxu0
        %v1667 = vadd.f32 0.0, %v1666
        %1668 = vmatmul.f32.gmra.mxu0 %v1553
        %v1669 = vpop.f32.mrf.mxu0
        %v1670 = vadd.f32 0.0, %v1669
        %1671 = vmatmul.f32.gmra.mxu0 %v1556
        %v1672 = vpop.f32.mrf.mxu0
        %v1673 = vadd.f32 0.0, %v1672
        %1674 = vmatmul.f32.gmra.mxu0 %v1559
        %v1675 = vpop.f32.mrf.mxu0
        %v1676 = vadd.f32 0.0, %v1675
        %1677 = vmatmul.f32.gmra.mxu0 %v1562
        %v1678 = vpop.f32.mrf.mxu0
        %v1679 = vadd.f32 0.0, %v1678
        %1680 = vmatmul.f32.gmra.mxu0 %v1565
        %v1681 = vpop.f32.mrf.mxu0
        %v1682 = vadd.f32 0.0, %v1681
        %1683 = vmatmul.f32.gmra.mxu0 %v1568
        %v1684 = vpop.f32.mrf.mxu0
        %v1685 = vadd.f32 0.0, %v1684
        %1686 = vmatmul.f32.gmra.mxu0 %v1571
        %v1687 = vpop.f32.mrf.mxu0
        %v1688 = vadd.f32 0.0, %v1687
        %1689 = vmatmul.f32.gmra.mxu0 %v1574
        %v1690 = vpop.f32.mrf.mxu0
        %v1691 = vadd.f32 0.0, %v1690
        %1692 = vmatmul.f32.gmra.mxu0 %v1577
        %v1693 = vpop.f32.mrf.mxu0
        %v1694 = vadd.f32 0.0, %v1693
        %1695 = vmatmul.f32.gmra.mxu0 %v1580
        %v1696 = vpop.f32.mrf.mxu0
        %v1697 = vadd.f32 0.0, %v1696
        %1698 = vmatmul.f32.gmra.mxu0 %v1583
        %v1699 = vpop.f32.mrf.mxu0
        %v1700 = vadd.f32 0.0, %v1699
        %1701 = vmatmul.f32.gmra.mxu0 %v1586
        %v1702 = vpop.f32.mrf.mxu0
        %v1703 = vadd.f32 0.0, %v1702
        %1704 = vmatmul.f32.gmra.mxu0 %v1589
        %v1705 = vpop.f32.mrf.mxu0
        %v1706 = vadd.f32 0.0, %v1705
        %1707 = vmatmul.f32.gmra.mxu0 %v1592
        %v1708 = vpop.f32.mrf.mxu0
        %v1709 = vadd.f32 0.0, %v1708
        %1710 = vmatmul.f32.gmra.mxu0 %v1595
        %v1711 = vpop.f32.mrf.mxu0
        %v1712 = vadd.f32 0.0, %v1711
        %1713 = vmatmul.f32.gmra.mxu0 %v1598
        %v1714 = vpop.f32.mrf.mxu0
        %v1715 = vadd.f32 0.0, %v1714
        %1716 = vmatmul.f32.gmra.mxu0 %v1601
        %v1717 = vpop.f32.mrf.mxu0
        %v1718 = vadd.f32 0.0, %v1717
        %1719 = vmatmul.f32.gmra.mxu0 %v1604
        %v1720 = vpop.f32.mrf.mxu0
        %v1721 = vadd.f32 0.0, %v1720
        %1722 = vdwg.mxu0
        %1723 = vst.msk [vmem:[%s181] sm:$0xff] %vm1273, %v1628
        %1724 = vst.msk [vmem:[%s181 + $0x8] sm:$0xff] %vm1273, %v1631
        %1725 = vst.msk [vmem:[%s181 + $0x10] sm:$0xff] %vm1273, %v1634
        %1726 = vst.msk [vmem:[%s181 + $0x18] sm:$0xff] %vm1273, %v1637
        %1727 = vst.msk [vmem:[%s181 + $0x20] sm:$0xff] %vm1273, %v1640
        %1728 = vst.msk [vmem:[%s181 + $0x28] sm:$0xff] %vm1273, %v1643
        %1729 = vst.msk [vmem:[%s181 + $0x30] sm:$0xff] %vm1273, %v1646
        %1730 = vst.msk [vmem:[%s181 + $0x38] sm:$0xff] %vm1273, %v1649
        %1731 = vst.msk [vmem:[%s181 + $0x40] sm:$0xff] %vm1273, %v1652
        %1732 = vst.msk [vmem:[%s181 + $0x48] sm:$0xff] %vm1273, %v1655
        %1733 = vst.msk [vmem:[%s181 + $0x50] sm:$0xff] %vm1273, %v1658
        %1734 = vst.msk [vmem:[%s181 + $0x58] sm:$0xff] %vm1273, %v1661
        %1735 = vst.msk [vmem:[%s181 + $0x60] sm:$0xff] %vm1273, %v1664
        %1736 = vst.msk [vmem:[%s181 + $0x68] sm:$0xff] %vm1273, %v1667
        %1737 = vst.msk [vmem:[%s181 + $0x70] sm:$0xff] %vm1273, %v1670
        %1738 = vst.msk [vmem:[%s181 + $0x78] sm:$0xff] %vm1273, %v1673
        %1739 = vst.msk [vmem:[%s181 + $0x80] sm:$0xff] %vm1273, %v1676
        %1740 = vst.msk [vmem:[%s181 + $0x88] sm:$0xff] %vm1273, %v1679
        %1741 = vst.msk [vmem:[%s181 + $0x90] sm:$0xff] %vm1273, %v1682
        %1742 = vst.msk [vmem:[%s181 + $0x98] sm:$0xff] %vm1273, %v1685
        %1743 = vst.msk [vmem:[%s181 + $0xa0] sm:$0xff] %vm1273, %v1688
        %1744 = vst.msk [vmem:[%s181 + $0xa8] sm:$0xff] %vm1273, %v1691
        %1745 = vst.msk [vmem:[%s181 + $0xb0] sm:$0xff] %vm1273, %v1694
        %1746 = vst.msk [vmem:[%s181 + $0xb8] sm:$0xff] %vm1273, %v1697
        %1747 = vst.msk [vmem:[%s181 + $0xc0] sm:$0xff] %vm1273, %v1700
        %1748 = vst.msk [vmem:[%s181 + $0xc8] sm:$0xff] %vm1273, %v1703
        %1749 = vst.msk [vmem:[%s181 + $0xd0] sm:$0xff] %vm1273, %v1706
        %1750 = vst.msk [vmem:[%s181 + $0xd8] sm:$0xff] %vm1273, %v1709
        %1751 = vst.msk [vmem:[%s181 + $0xe0] sm:$0xff] %vm1273, %v1712
        %1752 = vst.msk [vmem:[%s181 + $0xe8] sm:$0xff] %vm1273, %v1715
        %1753 = vst.msk [vmem:[%s181 + $0xf0] sm:$0xff] %vm1273, %v1718
        %1754 = vst.msk [vmem:[%s181 + $0xf8] sm:$0xff] %vm1273, %v1721
        %v1755 = vsel %vm1273, %v1628, 0.0
        %v1756 = vsel %vm1273, %v1631, 0.0
        %v1757 = vadd.f32 %v1755, %v1756
        %v1758 = vsel %vm1273, %v1634, 0.0
        %v1759 = vadd.f32 %v1757, %v1758
        %v1760 = vsel %vm1273, %v1637, 0.0
        %v1761 = vadd.f32 %v1759, %v1760
        %v1762 = vsel %vm1273, %v1640, 0.0
        %v1763 = vadd.f32 %v1761, %v1762
        %v1764 = vsel %vm1273, %v1643, 0.0
        %v1765 = vadd.f32 %v1763, %v1764
        %v1766 = vsel %vm1273, %v1646, 0.0
        %v1767 = vadd.f32 %v1765, %v1766
        %v1768 = vsel %vm1273, %v1649, 0.0
        %v1769 = vadd.f32 %v1767, %v1768
        %v1770 = vsel %vm1273, %v1652, 0.0
        %v1771 = vadd.f32 %v1769, %v1770
        %v1772 = vsel %vm1273, %v1655, 0.0
        %v1773 = vadd.f32 %v1771, %v1772
        %v1774 = vsel %vm1273, %v1658, 0.0
        %v1775 = vadd.f32 %v1773, %v1774
        %v1776 = vsel %vm1273, %v1661, 0.0
        %v1777 = vadd.f32 %v1775, %v1776
        %v1778 = vsel %vm1273, %v1664, 0.0
        %v1779 = vadd.f32 %v1777, %v1778
        %v1780 = vsel %vm1273, %v1667, 0.0
        %v1781 = vadd.f32 %v1779, %v1780
        %v1782 = vsel %vm1273, %v1670, 0.0
        %v1783 = vadd.f32 %v1781, %v1782
        %v1784 = vsel %vm1273, %v1673, 0.0
        %v1785 = vadd.f32 %v1783, %v1784
        %v1786 = vsel %vm1273, %v1676, 0.0
        %v1787 = vadd.f32 %v1785, %v1786
        %v1788 = vsel %vm1273, %v1679, 0.0
        %v1789 = vadd.f32 %v1787, %v1788
        %v1790 = vsel %vm1273, %v1682, 0.0
        %v1791 = vadd.f32 %v1789, %v1790
        %v1792 = vsel %vm1273, %v1685, 0.0
        %v1793 = vadd.f32 %v1791, %v1792
        %v1794 = vsel %vm1273, %v1688, 0.0
        %v1795 = vadd.f32 %v1793, %v1794
        %v1796 = vsel %vm1273, %v1691, 0.0
        %v1797 = vadd.f32 %v1795, %v1796
        %v1798 = vsel %vm1273, %v1694, 0.0
        %v1799 = vadd.f32 %v1797, %v1798
        %v1800 = vsel %vm1273, %v1697, 0.0
        %v1801 = vadd.f32 %v1799, %v1800
        %v1802 = vsel %vm1273, %v1700, 0.0
        %v1803 = vadd.f32 %v1801, %v1802
        %v1804 = vsel %vm1273, %v1703, 0.0
        %v1805 = vadd.f32 %v1803, %v1804
        %v1806 = vsel %vm1273, %v1706, 0.0
        %v1807 = vadd.f32 %v1805, %v1806
        %v1808 = vsel %vm1273, %v1709, 0.0
        %v1809 = vadd.f32 %v1807, %v1808
        %v1810 = vsel %vm1273, %v1712, 0.0
        %v1811 = vadd.f32 %v1809, %v1810
        %v1812 = vsel %vm1273, %v1715, 0.0
        %v1813 = vadd.f32 %v1811, %v1812
        %v1814 = vsel %vm1273, %v1718, 0.0
        %v1815 = vadd.f32 %v1813, %v1814
        %v1816 = vsel %vm1273, %v1721, 0.0
        %v1817 = vadd.f32 %v1815, %v1816
        %v1818 = vrot.slane %v1817, 4
        %v1819 = vadd.f32 %v1817, %v1818
        %v1820 = vrot.slane %v1819, 2
        %v1821 = vadd.f32 %v1819, %v1820
        %v1822 = vrot.slane %v1821, 1
        %v1823 = vadd.f32 %v1821, %v1822
        %v1824 = vmul.f32 %v1628, %v1628
        %v1825 = vmul.f32 %v1631, %v1631
        %v1826 = vmul.f32 %v1634, %v1634
        %v1827 = vmul.f32 %v1637, %v1637
        %v1828 = vmul.f32 %v1640, %v1640
        %v1829 = vmul.f32 %v1643, %v1643
        %v1830 = vmul.f32 %v1646, %v1646
        %v1831 = vmul.f32 %v1649, %v1649
        %v1832 = vmul.f32 %v1652, %v1652
        %v1833 = vmul.f32 %v1655, %v1655
        %v1834 = vmul.f32 %v1658, %v1658
        %v1835 = vmul.f32 %v1661, %v1661
        %v1836 = vmul.f32 %v1664, %v1664
        %v1837 = vmul.f32 %v1667, %v1667
        %v1838 = vmul.f32 %v1670, %v1670
        %v1839 = vmul.f32 %v1673, %v1673
        %v1840 = vmul.f32 %v1676, %v1676
        %v1841 = vmul.f32 %v1679, %v1679
        %v1842 = vmul.f32 %v1682, %v1682
        %v1843 = vmul.f32 %v1685, %v1685
        %v1844 = vmul.f32 %v1688, %v1688
        %v1845 = vmul.f32 %v1691, %v1691
        %v1846 = vmul.f32 %v1694, %v1694
        %v1847 = vmul.f32 %v1697, %v1697
        %v1848 = vmul.f32 %v1700, %v1700
        %v1849 = vmul.f32 %v1703, %v1703
        %v1850 = vmul.f32 %v1706, %v1706
        %v1851 = vmul.f32 %v1709, %v1709
        %v1852 = vmul.f32 %v1712, %v1712
        %v1853 = vmul.f32 %v1715, %v1715
        %v1854 = vmul.f32 %v1718, %v1718
        %v1855 = vmul.f32 %v1721, %v1721
        %v1856 = vsel %vm1273, %v1824, 0.0
        %v1857 = vsel %vm1273, %v1825, 0.0
        %v1858 = vadd.f32 %v1856, %v1857
        %v1859 = vsel %vm1273, %v1826, 0.0
        %v1860 = vadd.f32 %v1858, %v1859
        %v1861 = vsel %vm1273, %v1827, 0.0
        %v1862 = vadd.f32 %v1860, %v1861
        %v1863 = vsel %vm1273, %v1828, 0.0
        %v1864 = vadd.f32 %v1862, %v1863
        %v1865 = vsel %vm1273, %v1829, 0.0
        %v1866 = vadd.f32 %v1864, %v1865
        %v1867 = vsel %vm1273, %v1830, 0.0
        %v1868 = vadd.f32 %v1866, %v1867
        %v1869 = vsel %vm1273, %v1831, 0.0
        %v1870 = vadd.f32 %v1868, %v1869
        %v1871 = vsel %vm1273, %v1832, 0.0
        %v1872 = vadd.f32 %v1870, %v1871
        %v1873 = vsel %vm1273, %v1833, 0.0
        %v1874 = vadd.f32 %v1872, %v1873
        %v1875 = vsel %vm1273, %v1834, 0.0
        %v1876 = vadd.f32 %v1874, %v1875
        %v1877 = vsel %vm1273, %v1835, 0.0
        %v1878 = vadd.f32 %v1876, %v1877
        %v1879 = vsel %vm1273, %v1836, 0.0
        %v1880 = vadd.f32 %v1878, %v1879
        %v1881 = vsel %vm1273, %v1837, 0.0
        %v1882 = vadd.f32 %v1880, %v1881
        %v1883 = vsel %vm1273, %v1838, 0.0
        %v1884 = vadd.f32 %v1882, %v1883
        %v1885 = vsel %vm1273, %v1839, 0.0
        %v1886 = vadd.f32 %v1884, %v1885
        %v1887 = vsel %vm1273, %v1840, 0.0
        %v1888 = vadd.f32 %v1886, %v1887
        %v1889 = vsel %vm1273, %v1841, 0.0
        %v1890 = vadd.f32 %v1888, %v1889
        %v1891 = vsel %vm1273, %v1842, 0.0
        %v1892 = vadd.f32 %v1890, %v1891
        %v1893 = vsel %vm1273, %v1843, 0.0
        %v1894 = vadd.f32 %v1892, %v1893
        %v1895 = vsel %vm1273, %v1844, 0.0
        %v1896 = vadd.f32 %v1894, %v1895
        %v1897 = vsel %vm1273, %v1845, 0.0
        %v1898 = vadd.f32 %v1896, %v1897
        %v1899 = vsel %vm1273, %v1846, 0.0
        %v1900 = vadd.f32 %v1898, %v1899
        %v1901 = vsel %vm1273, %v1847, 0.0
        %v1902 = vadd.f32 %v1900, %v1901
        %v1903 = vsel %vm1273, %v1848, 0.0
        %v1904 = vadd.f32 %v1902, %v1903
        %v1905 = vsel %vm1273, %v1849, 0.0
        %v1906 = vadd.f32 %v1904, %v1905
        %v1907 = vsel %vm1273, %v1850, 0.0
        %v1908 = vadd.f32 %v1906, %v1907
        %v1909 = vsel %vm1273, %v1851, 0.0
        %v1910 = vadd.f32 %v1908, %v1909
        %v1911 = vsel %vm1273, %v1852, 0.0
        %v1912 = vadd.f32 %v1910, %v1911
        %v1913 = vsel %vm1273, %v1853, 0.0
        %v1914 = vadd.f32 %v1912, %v1913
        %v1915 = vsel %vm1273, %v1854, 0.0
        %v1916 = vadd.f32 %v1914, %v1915
        %v1917 = vsel %vm1273, %v1855, 0.0
        %v1918 = vadd.f32 %v1916, %v1917
        %v1919 = vrot.slane %v1918, 4
        %v1920 = vadd.f32 %v1918, %v1919
        %v1921 = vrot.slane %v1920, 2
        %v1922 = vadd.f32 %v1920, %v1921
        %v1923 = vrot.slane %v1922, 1
        %v1924 = vadd.f32 %v1922, %v1923
        %vm1925 = vcmask 1040384
        %v1926 = vsel %vm1925, %v1823, %v1924
        %vm1927 = vcmask 58368
        %1928 = vst.msk [vmem:[%s171] sm:$0x3] %vm1927, %v1926
        %p1929 = scmp.lt.s32.totalorder %s18, 1
        %s1930 = scalar_select %p1929, %s18, 1
        %s1931 = smul.addr %s1930, 32
        %s1932 = smul.addr %s1931, 8
        %s1933 = scalar_lea.vmem %s2, %s1932
        %s1934 = sand.u32 %s99, 1
        %s1935 = scalar_lea.sflag [#allocation3], %s1934
        %s1936 = sand.u32 %s99, 1
        %s1937 = smul.addr %s1936, 2
        %s1938 = scalar_lea.vmem [#allocation2], %s1937
        // Predicated region
        $region29: #{tpu_custom_call.1} parent=27 // pred_check
          %p1939 = pneg %p83
        $region30: #{tpu_custom_call.1} parent=27 // pred_check_branch
          %1941 = sbr.rel (%p1939) target = $region32
        $region31: #{tpu_custom_call.1} parent=27 // pred_region
          _
        $region32: #{tpu_custom_call.1} parent=27 // pred_fallthru
          _
        // Predicated region
        $region33: #{tpu_custom_call.1} parent=27 // pred_check
          %p1942 = pneg %p109
        $region34: #{tpu_custom_call.1} parent=27 // pred_check_branch
          %1944 = sbr.rel (%p1942) target = $region36
        $region35: #{tpu_custom_call.1} parent=27 // pred_region
          %1946 = vsyncadd %s1935, 0
          %s1947 = smul.addr %s18, 2
          %s1948 = scalar_lea.hbm %s3, %s1947
          %s1950 = sshll.u32 %s1938, 4
          %s1951 = int_to_ptr.vmem [resolvable:$true] %s1950
          %s1952 = sshll.u32 %s1948, 4
          %s1953 = int_to_ptr.hbm [resolvable:$true] %s1952
          %1955 = dma.vmem_to_hbm [thread:$0]  %s1951, 32, %s1953, %s1935
        $region36: #{tpu_custom_call.1} parent=27 // pred_fallthru
          _
      $region28: #{tpu_custom_call.1} parent=5 // pred_fallthru
        _
      %p1956 = scmp.le.s32.totalorder 2, %s13
      // Predicated region
      $region37: #{tpu_custom_call.1} parent=5 // pred_check
        %p1957 = pneg %p1956
      $region38: #{tpu_custom_call.1} parent=5 // pred_check_branch
        %1959 = sbr.rel (%p1957) target = $region40
      $region39: #{tpu_custom_call.1} parent=5 // pred_region
        %s1960 = ssub.s32 %s13, 2
        // Predicated region
        $region41: #{tpu_custom_call.1} parent=39 // pred_check
          %p1961 = pneg %p89
        $region42: #{tpu_custom_call.1} parent=39 // pred_check_branch
          %1963 = sbr.rel (%p1961) target = $region44
        $region43: #{tpu_custom_call.1} parent=39 // pred_region
          %p1964 = scmp.lt.s32.totalorder %s19, 1
          %s1965 = scalar_select %p1964, %s19, 1
          %s1966 = smul.addr %s1965, 32
          %s1967 = smul.addr %s1966, 8
          %s1968 = scalar_lea.vmem %s2, %s1967
        $region44: #{tpu_custom_call.1} parent=39 // pred_fallthru
          _
        // Predicated region
        $region45: #{tpu_custom_call.1} parent=39 // pred_check
          %p1969 = pneg %p115
        $region46: #{tpu_custom_call.1} parent=39 // pred_check_branch
          %1971 = sbr.rel (%p1969) target = $region48
        $region47: #{tpu_custom_call.1} parent=39 // pred_region
          %s1972 = sand.u32 %s100, 1
          %s1973 = scalar_lea.sflag [#allocation3], %s1972
          %s1974 = sand.u32 %s100, 1
          %s1975 = smul.addr %s1974, 2
          %s1976 = scalar_lea.vmem [#allocation2], %s1975
          %1978 = dma.done %s1973, 32
        $region48: #{tpu_custom_call.1} parent=39 // pred_fallthru
          _
      $region40: #{tpu_custom_call.1} parent=5 // pred_fallthru
        _
    $region6: #{tpu_custom_call.1} parent=1 // loop_footer
      %s17 = sadd.s32 1, %s13
    $region7: #{tpu_custom_call.1} parent=1 // loop_footer_branch
      %12 = sbr.rel target = $region3
    $region8: #{tpu_custom_call.1} parent=1 // loop_exit
      _
    %1979 = vsyncpa [#allocation3], 1
    %s1980 = scalar_lea.sflag [#allocation3], 1
    %1981 = vsyncpa %s1980, 1

</llo_original>
